<compile_context>
chip_gen: v7x
topology: tpu7x:2x2x1
jax: 0.10.0
libtpu: 0.0.40
codegen_flags: <defaults>
</compile_context>

<pallas_src>
import math

import jax
import jax.numpy as jnp
from jax import lax
from jax.experimental import pallas as pl
from jax.experimental.pallas import tpu as pltpu

# Small synthetic config (config.hidden_dim=H, embedding_dim=E, class_size=C).
B, S, E, H, C = 2, 8, 16, 32, 5
NUM_WORDS = 50

assert H & (H - 1) == 0, "lane-mask trick below assumes H is a power of two"


def _sigmoid(x):
    # one EUP op (tanh) instead of exp + divide
    return 0.5 * (jnp.tanh(0.5 * x) + 1.0)


_INV_SQRT2 = 1.0 / math.sqrt(2.0)


def _gelu_exact(x):
    # exact (erf) GELU, matching torch.nn.GELU(); erf via Abramowitz & Stegun
    # 7.1.26 polynomial (|err| < 1.5e-7).  Exact divide (tiny, once per step)
    # keeps us comfortably inside the 2e-3 tolerance.
    z = x * _INV_SQRT2
    a1, a2, a3, a4, a5 = 0.254829592, -0.284496736, 1.421413741, -1.453152027, 1.061405429
    p = 0.3275911
    az = jnp.abs(z)
    t = 1.0 / (1.0 + p * az)
    poly = ((((a5 * t + a4) * t + a3) * t + a2) * t + a1) * t
    y = 1.0 - poly * jnp.exp(-az * az)
    erf = jnp.where(z >= 0, y, -y)
    return 0.5 * x * (1.0 + erf)


def charbilstm_kernel(emb_ref, memb_ref, wih_ref, bih_ref, whh_ref,
                      wpred_ref, bpred_ref, out_ref):
    f32 = jnp.float32
    G = 8 * H        # packed gate width (both directions)
    H2 = 2 * H       # packed hidden width (both directions)

    # masked character embedding fused into the hoisted ih projection:
    # gx[s*B + b, :] = x[s, b] @ [wih_f | wih_b] + (b_ih + b_hh), both dirs.
    x = emb_ref[...] * _sigmoid(memb_ref[...])                         # (S*B, E)
    gx = (jnp.dot(x, wih_ref[...], preferred_element_type=f32)
          + bih_ref[...])                                              # (S*B, 8H)

    whh = whh_ref[...]                                                 # (2H, 8H)

    # lane masks: gate columns are [i_f,i_b,f_f,f_b,g_f,g_b,o_f,o_b], H each.
    lane = lax.broadcasted_iota(jnp.int32, (B, G), 1)
    is_fwd = (lane & H) == 0                    # even H-blocks = forward dir
    is_g = jnp.logical_and(lane >= 4 * H, lane < 6 * H)                # g gate

    h = jnp.zeros((B, H2), f32)
    c = jnp.zeros((B, H2), f32)
    acc = jnp.zeros((B, H2), f32)               # sum_t gelu(h_t), packed [f|b]

    # static unroll over S; fwd/bwd directions run fused in one packed tile.
    for s in range(S):
        gx_f = gx[s * B:(s + 1) * B, :]                 # fwd consumes x[s]
        gx_b = gx[(S - 1 - s) * B:(S - s) * B, :]       # bwd consumes x[S-1-s]
        gates = (jnp.where(is_fwd, gx_f, gx_b)
                 + jnp.dot(h, whh, preferred_element_type=f32))        # (B, 8H)
        # single full-width tanh: tanh(g) directly, sigmoid(i,f,o) via
        # 0.5*(1 + tanh(x/2))
        t = jnp.tanh(jnp.where(is_g, gates, 0.5 * gates))
        act = jnp.where(is_g, t, 0.5 * (t + 1.0))                      # (B, 8H)
        i_ = act[:, 0:H2]            # [i_f | i_b]
        f_ = act[:, H2:2 * H2]       # [f_f | f_b]
        g_ = act[:, 2 * H2:3 * H2]   # [g_f | g_b]
        o_ = act[:, 3 * H2:4 * H2]   # [o_f | o_b]
        c = f_ * c + i_ * g_
        h = o_ * jnp.tanh(c)
        acc = acc + _gelu_exact(h)

    # prediction head + log-softmax.  (C=5 -> masked partial store; pad toward
    # 128 lanes if the head ever grows.)
    logits = (jnp.dot(acc, wpred_ref[...], preferred_element_type=f32)
              + bpred_ref[...])                                        # (B, C)
    z = logits - jnp.max(logits, axis=1, keepdims=True)
    out_ref[...] = z - jnp.log(jnp.sum(jnp.exp(z), axis=1, keepdims=True))


# ----------------------------- weight packing --------------------------------
def _pack_ih(w_ih_f, w_ih_b):
    # (4H, E) torch layout [i;f;g;o] per direction -> (E, 8H) columns
    # [i_f, i_b, f_f, f_b, g_f, g_b, o_f, o_b]
    blocks = []
    for k in range(4):
        blocks.append(w_ih_f[k * H:(k + 1) * H, :].T)
        blocks.append(w_ih_b[k * H:(k + 1) * H, :].T)
    return jnp.concatenate(blocks, axis=1).astype(jnp.float32)


def _pack_bias(b_f, b_b):
    # b_f/b_b = (b_ih + b_hh) per direction, (4H,) -> (1, 8H) interleaved
    blocks = []
    for k in range(4):
        blocks.append(b_f[k * H:(k + 1) * H])
        blocks.append(b_b[k * H:(k + 1) * H])
    return jnp.concatenate(blocks).reshape(1, 8 * H).astype(jnp.float32)


def _pack_hh(w_hh_f, w_hh_b):
    # block-diagonal (2H, 8H): rows 0:H fed by h_f, rows H:2H fed by h_b,
    # columns interleaved per gate/direction like _pack_ih.
    z = jnp.zeros((H, H), jnp.float32)
    blocks = []
    for k in range(4):
        blocks.append(jnp.concatenate([w_hh_f[k * H:(k + 1) * H, :].T, z], axis=0))
        blocks.append(jnp.concatenate([z, w_hh_b[k * H:(k + 1) * H, :].T], axis=0))
    return jnp.concatenate(blocks, axis=1).astype(jnp.float32)


def charbilstm_forward(content_chars, c_mask, params):
    # embedding lookups (gathers), transposes and weight packing = JAX glue
    c_emb = jnp.take(params["w_embedding"], content_chars, axis=0)     # (B, S, E)
    m_emb = jnp.take(params["mask_embedding"], c_mask, axis=0)         # (B, S, E)
    emb = jnp.transpose(c_emb, (1, 0, 2)).reshape(S * B, E).astype(jnp.float32)
    memb = jnp.transpose(m_emb, (1, 0, 2)).reshape(S * B, E).astype(jnp.float32)

    wih = _pack_ih(params["w_ih_f"], params["w_ih_b"])                 # (E, 8H)
    bih = _pack_bias(params["b_ih_f"] + params["b_hh_f"],
                     params["b_ih_b"] + params["b_hh_b"])              # (1, 8H)
    whh = _pack_hh(params["w_hh_f"], params["w_hh_b"])                 # (2H, 8H)
    wpred = params["w_pred"].T.astype(jnp.float32)                     # (2H, C)
    bpred = params["b_pred"].reshape(1, C).astype(jnp.float32)

    vmem = pl.BlockSpec(memory_space=pltpu.MemorySpace.VMEM)
    return pl.pallas_call(
        charbilstm_kernel,
        out_shape=jax.ShapeDtypeStruct((B, C), jnp.float32),
        in_specs=[vmem] * 7,
        out_specs=vmem,
    )(emb, memb, wih, bih, whh, wpred, bpred)


def reference_forward(content_chars, c_mask, params):
    """Pure-JAX reference mirroring the PyTorch forward exactly."""
    c_emb = jnp.take(params["w_embedding"], content_chars, axis=0)
    m_emb = jnp.take(params["mask_embedding"], c_mask, axis=0)
    x = c_emb * jax.nn.sigmoid(m_emb)                                  # (B, S, E)

    def run_dir(xs, wih, whh, bih, bhh):
        def step(carry, x_t):
            h, c = carry
            gates = x_t @ wih.T + bih + h @ whh.T + bhh
            i, f, g, o = jnp.split(gates, 4, axis=-1)
            c = jax.nn.sigmoid(f) * c + jax.nn.sigmoid(i) * jnp.tanh(g)
            h = jax.nn.sigmoid(o) * jnp.tanh(c)
            return (h, c), h
        init = (jnp.zeros((B, H), jnp.float32), jnp.zeros((B, H), jnp.float32))
        _, hs = lax.scan(step, init, jnp.transpose(xs, (1, 0, 2)))
        return jnp.transpose(hs, (1, 0, 2))                            # (B, S, H)

    h_f = run_dir(x, params["w_ih_f"], params["w_hh_f"],
                  params["b_ih_f"], params["b_hh_f"])
    h_b = run_dir(x[:, ::-1], params["w_ih_b"], params["w_hh_b"],
                  params["b_ih_b"], params["b_hh_b"])[:, ::-1]
    h = jax.nn.gelu(jnp.concatenate([h_f, h_b], axis=-1), approximate=False)
    feat = h.sum(axis=1)
    logits = feat @ params["w_pred"].T + params["b_pred"]
    return jax.nn.log_softmax(logits, axis=1)


if __name__ == "__main__":
    key = jax.random.PRNGKey(0)
    ks = jax.random.split(key, 16)
    scale = 0.1
    params = {
        "w_embedding":    scale * jax.random.normal(ks[0], (NUM_WORDS, E), jnp.float32),
        "mask_embedding": scale * jax.random.normal(ks[1], (2, E), jnp.float32),
        "w_ih_f":         scale * jax.random.normal(ks[2], (4 * H, E), jnp.float32),
        "w_hh_f":         scale * jax.random.normal(ks[3], (4 * H, H), jnp.float32),
        "b_ih_f":         scale * jax.random.normal(ks[4], (4 * H,), jnp.float32),
        "b_hh_f":         scale * jax.random.normal(ks[5], (4 * H,), jnp.float32),
        "w_ih_b":         scale * jax.random.normal(ks[6], (4 * H, E), jnp.float32),
        "w_hh_b":         scale * jax.random.normal(ks[7], (4 * H, H), jnp.float32),
        "b_ih_b":         scale * jax.random.normal(ks[8], (4 * H,), jnp.float32),
        "b_hh_b":         scale * jax.random.normal(ks[9], (4 * H,), jnp.float32),
        "w_pred":         scale * jax.random.normal(ks[10], (C, 2 * H), jnp.float32),
        "b_pred":         scale * jax.random.normal(ks[11], (C,), jnp.float32),
    }
    content_chars = jax.random.randint(ks[12], (B, S), 0, NUM_WORDS, dtype=jnp.int32)
    c_mask = jax.random.randint(ks[13], (B, S), 0, 2, dtype=jnp.int32)

    out = jax.block_until_ready(charbilstm_forward(content_chars, c_mask, params))
    ref = jax.block_until_ready(reference_forward(content_chars, c_mask, params))

    assert out.shape == (B, C), out.shape
    assert jnp.allclose(out, ref, atol=2e-3, rtol=2e-3), (out, ref)
    print("KERNEL_OK")
</pallas_src>

<mosaic_0001>
module attributes {stable_mosaic.version = 11 : i64} {
  func.func @charbilstm_kernel(%arg0: memref<16x16xf32, #tpu.memory_space<vmem>>, %arg1: memref<16x16xf32, #tpu.memory_space<vmem>>, %arg2: memref<16x256xf32, #tpu.memory_space<vmem>>, %arg3: memref<1x256xf32, #tpu.memory_space<vmem>>, %arg4: memref<64x256xf32, #tpu.memory_space<vmem>>, %arg5: memref<64x5xf32, #tpu.memory_space<vmem>>, %arg6: memref<1x5xf32, #tpu.memory_space<vmem>>, %arg7: memref<2x5xf32, #tpu.memory_space<vmem>>) attributes {dimension_semantics = [], scalar_prefetch = 0 : i64, scratch_operands = 0 : i64, tpu.core_type = #tpu.core_type<tc>} {
    %c0 = arith.constant 0 : index
    %c0_0 = arith.constant 0 : index
    %0 = vector.load %arg0[%c0, %c0_0] : memref<16x16xf32, #tpu.memory_space<vmem>>, vector<16x16xf32>
    %c0_1 = arith.constant 0 : index
    %c0_2 = arith.constant 0 : index
    %1 = vector.load %arg1[%c0_1, %c0_2] : memref<16x16xf32, #tpu.memory_space<vmem>>, vector<16x16xf32>
    %cst = arith.constant 5.000000e-01 : f32
    %2 = vector.broadcast %cst : f32 to vector<16x16xf32>
    %3 = arith.mulf %2, %1 : vector<16x16xf32>
    %4 = math.tanh %3 : vector<16x16xf32>
    %cst_3 = arith.constant 1.000000e+00 : f32
    %5 = vector.broadcast %cst_3 : f32 to vector<16x16xf32>
    %6 = arith.addf %4, %5 : vector<16x16xf32>
    %cst_4 = arith.constant 5.000000e-01 : f32
    %7 = vector.broadcast %cst_4 : f32 to vector<16x16xf32>
    %8 = arith.mulf %7, %6 : vector<16x16xf32>
    %9 = arith.mulf %0, %8 : vector<16x16xf32>
    %c0_5 = arith.constant 0 : index
    %c0_6 = arith.constant 0 : index
    %10 = vector.load %arg2[%c0_5, %c0_6] : memref<16x256xf32, #tpu.memory_space<vmem>>, vector<16x256xf32>
    %cst_7 = arith.constant dense<0.000000e+00> : vector<16x256xf32>
    %11 = tpu.matmul %9, %10, %cst_7 {dimension_numbers = #tpu.dot_dimension_numbers<[1], [0], [0], [1], [0, 0, 1, 1], [], []>} : vector<16x16xf32>, vector<16x256xf32>, vector<16x256xf32> -> vector<16x256xf32>
    %c0_8 = arith.constant 0 : index
    %c0_9 = arith.constant 0 : index
    %12 = vector.load %arg3[%c0_8, %c0_9] : memref<1x256xf32, #tpu.memory_space<vmem>>, vector<1x256xf32>
    %13 = vector.broadcast %12 : vector<1x256xf32> to vector<16x256xf32>
    %14 = arith.addf %11, %13 : vector<16x256xf32>
    %c0_10 = arith.constant 0 : index
    %c0_11 = arith.constant 0 : index
    %15 = vector.load %arg4[%c0_10, %c0_11] : memref<64x256xf32, #tpu.memory_space<vmem>>, vector<64x256xf32>
    %16 = tpu.iota {dimensions = array<i32: 1>} : vector<2x256xi32>
    %c32_i32 = arith.constant 32 : i32
    %17 = vector.broadcast %c32_i32 : i32 to vector<2x256xi32>
    %18 = arith.andi %16, %17 : vector<2x256xi32>
    %c0_i32 = arith.constant 0 : i32
    %19 = vector.broadcast %c0_i32 : i32 to vector<2x256xi32>
    %20 = arith.cmpi eq, %18, %19 : vector<2x256xi32>
    %c128_i32 = arith.constant 128 : i32
    %21 = vector.broadcast %c128_i32 : i32 to vector<2x256xi32>
    %22 = arith.cmpi sge, %16, %21 : vector<2x256xi32>
    %c192_i32 = arith.constant 192 : i32
    %23 = vector.broadcast %c192_i32 : i32 to vector<2x256xi32>
    %24 = arith.cmpi slt, %16, %23 : vector<2x256xi32>
    %25 = arith.andi %22, %24 : vector<2x256xi1>
    %cst_12 = arith.constant 0.000000e+00 : f32
    %26 = vector.broadcast %cst_12 : f32 to vector<2x64xf32>
    %cst_13 = arith.constant 0.000000e+00 : f32
    %27 = vector.broadcast %cst_13 : f32 to vector<2x64xf32>
    %cst_14 = arith.constant 0.000000e+00 : f32
    %28 = vector.broadcast %cst_14 : f32 to vector<2x64xf32>
    %29 = vector.extract_strided_slice %14 {offsets = [0, 0], sizes = [2, 256], strides = [1, 1]} : vector<16x256xf32> to vector<2x256xf32>
    %30 = vector.extract_strided_slice %14 {offsets = [14, 0], sizes = [2, 256], strides = [1, 1]} : vector<16x256xf32> to vector<2x256xf32>
    %31 = arith.select %20, %29, %30 : vector<2x256xi1>, vector<2x256xf32>
    %cst_15 = arith.constant dense<0.000000e+00> : vector<2x256xf32>
    %32 = tpu.matmul %26, %15, %cst_15 {dimension_numbers = #tpu.dot_dimension_numbers<[1], [0], [0], [1], [0, 0, 1, 1], [], []>} : vector<2x64xf32>, vector<64x256xf32>, vector<2x256xf32> -> vector<2x256xf32>
    %33 = arith.addf %31, %32 : vector<2x256xf32>
    %cst_16 = arith.constant 5.000000e-01 : f32
    %34 = vector.broadcast %cst_16 : f32 to vector<2x256xf32>
    %35 = arith.mulf %34, %33 : vector<2x256xf32>
    %36 = arith.select %25, %33, %35 : vector<2x256xi1>, vector<2x256xf32>
    %37 = math.tanh %36 : vector<2x256xf32>
    %cst_17 = arith.constant 1.000000e+00 : f32
    %38 = vector.broadcast %cst_17 : f32 to vector<2x256xf32>
    %39 = arith.addf %37, %38 : vector<2x256xf32>
    %cst_18 = arith.constant 5.000000e-01 : f32
    %40 = vector.broadcast %cst_18 : f32 to vector<2x256xf32>
    %41 = arith.mulf %40, %39 : vector<2x256xf32>
    %42 = arith.select %25, %37, %41 : vector<2x256xi1>, vector<2x256xf32>
    %43 = vector.extract_strided_slice %42 {offsets = [0, 0], sizes = [2, 64], strides = [1, 1]} : vector<2x256xf32> to vector<2x64xf32>
    %44 = vector.extract_strided_slice %42 {offsets = [0, 64], sizes = [2, 64], strides = [1, 1]} : vector<2x256xf32> to vector<2x64xf32>
    %45 = vector.extract_strided_slice %42 {offsets = [0, 128], sizes = [2, 64], strides = [1, 1]} : vector<2x256xf32> to vector<2x64xf32>
    %46 = vector.extract_strided_slice %42 {offsets = [0, 192], sizes = [2, 64], strides = [1, 1]} : vector<2x256xf32> to vector<2x64xf32>
    %47 = arith.mulf %44, %27 : vector<2x64xf32>
    %48 = arith.mulf %43, %45 : vector<2x64xf32>
    %49 = arith.addf %47, %48 : vector<2x64xf32>
    %50 = math.tanh %49 : vector<2x64xf32>
    %51 = arith.mulf %46, %50 : vector<2x64xf32>
    %cst_19 = arith.constant 0.707106769 : f32
    %52 = vector.broadcast %cst_19 : f32 to vector<2x64xf32>
    %53 = arith.mulf %51, %52 : vector<2x64xf32>
    %54 = math.absf %53 : vector<2x64xf32>
    %cst_20 = arith.constant 0.327591091 : f32
    %55 = vector.broadcast %cst_20 : f32 to vector<2x64xf32>
    %56 = arith.mulf %55, %54 : vector<2x64xf32>
    %cst_21 = arith.constant 1.000000e+00 : f32
    %57 = vector.broadcast %cst_21 : f32 to vector<2x64xf32>
    %58 = arith.addf %57, %56 : vector<2x64xf32>
    %cst_22 = arith.constant 1.000000e+00 : f32
    %59 = vector.broadcast %cst_22 : f32 to vector<2x64xf32>
    %60 = arith.divf %59, %58 : vector<2x64xf32>
    %cst_23 = arith.constant 1.06140542 : f32
    %61 = vector.broadcast %cst_23 : f32 to vector<2x64xf32>
    %62 = arith.mulf %61, %60 : vector<2x64xf32>
    %cst_24 = arith.constant -1.45315206 : f32
    %63 = vector.broadcast %cst_24 : f32 to vector<2x64xf32>
    %64 = arith.addf %62, %63 : vector<2x64xf32>
    %65 = arith.mulf %64, %60 : vector<2x64xf32>
    %cst_25 = arith.constant 1.42141378 : f32
    %66 = vector.broadcast %cst_25 : f32 to vector<2x64xf32>
    %67 = arith.addf %65, %66 : vector<2x64xf32>
    %68 = arith.mulf %67, %60 : vector<2x64xf32>
    %cst_26 = arith.constant -0.284496725 : f32
    %69 = vector.broadcast %cst_26 : f32 to vector<2x64xf32>
    %70 = arith.addf %68, %69 : vector<2x64xf32>
    %71 = arith.mulf %70, %60 : vector<2x64xf32>
    %cst_27 = arith.constant 0.254829586 : f32
    %72 = vector.broadcast %cst_27 : f32 to vector<2x64xf32>
    %73 = arith.addf %71, %72 : vector<2x64xf32>
    %74 = arith.mulf %73, %60 : vector<2x64xf32>
    %cst_28 = arith.constant 0.000000e+00 : f32
    %75 = vector.broadcast %cst_28 : f32 to vector<2x64xf32>
    %76 = arith.subf %75, %54 : vector<2x64xf32>
    %77 = arith.mulf %76, %54 : vector<2x64xf32>
    %78 = math.exp %77 : vector<2x64xf32>
    %79 = arith.mulf %74, %78 : vector<2x64xf32>
    %cst_29 = arith.constant 1.000000e+00 : f32
    %80 = vector.broadcast %cst_29 : f32 to vector<2x64xf32>
    %81 = arith.subf %80, %79 : vector<2x64xf32>
    %cst_30 = arith.constant 0.000000e+00 : f32
    %82 = vector.broadcast %cst_30 : f32 to vector<2x64xf32>
    %83 = arith.cmpf oge, %53, %82 : vector<2x64xf32>
    %cst_31 = arith.constant 0.000000e+00 : f32
    %84 = vector.broadcast %cst_31 : f32 to vector<2x64xf32>
    %85 = arith.subf %84, %81 : vector<2x64xf32>
    %86 = arith.select %83, %81, %85 : vector<2x64xi1>, vector<2x64xf32>
    %cst_32 = arith.constant 5.000000e-01 : f32
    %87 = vector.broadcast %cst_32 : f32 to vector<2x64xf32>
    %88 = arith.mulf %87, %51 : vector<2x64xf32>
    %cst_33 = arith.constant 1.000000e+00 : f32
    %89 = vector.broadcast %cst_33 : f32 to vector<2x64xf32>
    %90 = arith.addf %89, %86 : vector<2x64xf32>
    %91 = arith.mulf %88, %90 : vector<2x64xf32>
    %92 = arith.addf %28, %91 : vector<2x64xf32>
    %93 = vector.extract_strided_slice %14 {offsets = [2, 0], sizes = [2, 256], strides = [1, 1]} : vector<16x256xf32> to vector<2x256xf32>
    %94 = vector.extract_strided_slice %14 {offsets = [12, 0], sizes = [2, 256], strides = [1, 1]} : vector<16x256xf32> to vector<2x256xf32>
    %95 = arith.select %20, %93, %94 : vector<2x256xi1>, vector<2x256xf32>
    %cst_34 = arith.constant dense<0.000000e+00> : vector<2x256xf32>
    %96 = tpu.matmul %51, %15, %cst_34 {dimension_numbers = #tpu.dot_dimension_numbers<[1], [0], [0], [1], [0, 0, 1, 1], [], []>} : vector<2x64xf32>, vector<64x256xf32>, vector<2x256xf32> -> vector<2x256xf32>
    %97 = arith.addf %95, %96 : vector<2x256xf32>
    %cst_35 = arith.constant 5.000000e-01 : f32
    %98 = vector.broadcast %cst_35 : f32 to vector<2x256xf32>
    %99 = arith.mulf %98, %97 : vector<2x256xf32>
    %100 = arith.select %25, %97, %99 : vector<2x256xi1>, vector<2x256xf32>
    %101 = math.tanh %100 : vector<2x256xf32>
    %cst_36 = arith.constant 1.000000e+00 : f32
    %102 = vector.broadcast %cst_36 : f32 to vector<2x256xf32>
    %103 = arith.addf %101, %102 : vector<2x256xf32>
    %cst_37 = arith.constant 5.000000e-01 : f32
    %104 = vector.broadcast %cst_37 : f32 to vector<2x256xf32>
    %105 = arith.mulf %104, %103 : vector<2x256xf32>
    %106 = arith.select %25, %101, %105 : vector<2x256xi1>, vector<2x256xf32>
    %107 = vector.extract_strided_slice %106 {offsets = [0, 0], sizes = [2, 64], strides = [1, 1]} : vector<2x256xf32> to vector<2x64xf32>
    %108 = vector.extract_strided_slice %106 {offsets = [0, 64], sizes = [2, 64], strides = [1, 1]} : vector<2x256xf32> to vector<2x64xf32>
    %109 = vector.extract_strided_slice %106 {offsets = [0, 128], sizes = [2, 64], strides = [1, 1]} : vector<2x256xf32> to vector<2x64xf32>
    %110 = vector.extract_strided_slice %106 {offsets = [0, 192], sizes = [2, 64], strides = [1, 1]} : vector<2x256xf32> to vector<2x64xf32>
    %111 = arith.mulf %108, %49 : vector<2x64xf32>
    %112 = arith.mulf %107, %109 : vector<2x64xf32>
    %113 = arith.addf %111, %112 : vector<2x64xf32>
    %114 = math.tanh %113 : vector<2x64xf32>
    %115 = arith.mulf %110, %114 : vector<2x64xf32>
    %cst_38 = arith.constant 0.707106769 : f32
    %116 = vector.broadcast %cst_38 : f32 to vector<2x64xf32>
    %117 = arith.mulf %115, %116 : vector<2x64xf32>
    %118 = math.absf %117 : vector<2x64xf32>
    %cst_39 = arith.constant 0.327591091 : f32
    %119 = vector.broadcast %cst_39 : f32 to vector<2x64xf32>
    %120 = arith.mulf %119, %118 : vector<2x64xf32>
    %cst_40 = arith.constant 1.000000e+00 : f32
    %121 = vector.broadcast %cst_40 : f32 to vector<2x64xf32>
    %122 = arith.addf %121, %120 : vector<2x64xf32>
    %cst_41 = arith.constant 1.000000e+00 : f32
    %123 = vector.broadcast %cst_41 : f32 to vector<2x64xf32>
    %124 = arith.divf %123, %122 : vector<2x64xf32>
    %cst_42 = arith.constant 1.06140542 : f32
    %125 = vector.broadcast %cst_42 : f32 to vector<2x64xf32>
    %126 = arith.mulf %125, %124 : vector<2x64xf32>
    %cst_43 = arith.constant -1.45315206 : f32
    %127 = vector.broadcast %cst_43 : f32 to vector<2x64xf32>
    %128 = arith.addf %126, %127 : vector<2x64xf32>
    %129 = arith.mulf %128, %124 : vector<2x64xf32>
    %cst_44 = arith.constant 1.42141378 : f32
    %130 = vector.broadcast %cst_44 : f32 to vector<2x64xf32>
    %131 = arith.addf %129, %130 : vector<2x64xf32>
    %132 = arith.mulf %131, %124 : vector<2x64xf32>
    %cst_45 = arith.constant -0.284496725 : f32
    %133 = vector.broadcast %cst_45 : f32 to vector<2x64xf32>
    %134 = arith.addf %132, %133 : vector<2x64xf32>
    %135 = arith.mulf %134, %124 : vector<2x64xf32>
    %cst_46 = arith.constant 0.254829586 : f32
    %136 = vector.broadcast %cst_46 : f32 to vector<2x64xf32>
    %137 = arith.addf %135, %136 : vector<2x64xf32>
    %138 = arith.mulf %137, %124 : vector<2x64xf32>
    %cst_47 = arith.constant 0.000000e+00 : f32
    %139 = vector.broadcast %cst_47 : f32 to vector<2x64xf32>
    %140 = arith.subf %139, %118 : vector<2x64xf32>
    %141 = arith.mulf %140, %118 : vector<2x64xf32>
    %142 = math.exp %141 : vector<2x64xf32>
    %143 = arith.mulf %138, %142 : vector<2x64xf32>
    %cst_48 = arith.constant 1.000000e+00 : f32
    %144 = vector.broadcast %cst_48 : f32 to vector<2x64xf32>
    %145 = arith.subf %144, %143 : vector<2x64xf32>
    %cst_49 = arith.constant 0.000000e+00 : f32
    %146 = vector.broadcast %cst_49 : f32 to vector<2x64xf32>
    %147 = arith.cmpf oge, %117, %146 : vector<2x64xf32>
    %cst_50 = arith.constant 0.000000e+00 : f32
    %148 = vector.broadcast %cst_50 : f32 to vector<2x64xf32>
    %149 = arith.subf %148, %145 : vector<2x64xf32>
    %150 = arith.select %147, %145, %149 : vector<2x64xi1>, vector<2x64xf32>
    %cst_51 = arith.constant 5.000000e-01 : f32
    %151 = vector.broadcast %cst_51 : f32 to vector<2x64xf32>
    %152 = arith.mulf %151, %115 : vector<2x64xf32>
    %cst_52 = arith.constant 1.000000e+00 : f32
    %153 = vector.broadcast %cst_52 : f32 to vector<2x64xf32>
    %154 = arith.addf %153, %150 : vector<2x64xf32>
    %155 = arith.mulf %152, %154 : vector<2x64xf32>
    %156 = arith.addf %92, %155 : vector<2x64xf32>
    %157 = vector.extract_strided_slice %14 {offsets = [4, 0], sizes = [2, 256], strides = [1, 1]} : vector<16x256xf32> to vector<2x256xf32>
    %158 = vector.extract_strided_slice %14 {offsets = [10, 0], sizes = [2, 256], strides = [1, 1]} : vector<16x256xf32> to vector<2x256xf32>
    %159 = arith.select %20, %157, %158 : vector<2x256xi1>, vector<2x256xf32>
    %cst_53 = arith.constant dense<0.000000e+00> : vector<2x256xf32>
    %160 = tpu.matmul %115, %15, %cst_53 {dimension_numbers = #tpu.dot_dimension_numbers<[1], [0], [0], [1], [0, 0, 1, 1], [], []>} : vector<2x64xf32>, vector<64x256xf32>, vector<2x256xf32> -> vector<2x256xf32>
    %161 = arith.addf %159, %160 : vector<2x256xf32>
    %cst_54 = arith.constant 5.000000e-01 : f32
    %162 = vector.broadcast %cst_54 : f32 to vector<2x256xf32>
    %163 = arith.mulf %162, %161 : vector<2x256xf32>
    %164 = arith.select %25, %161, %163 : vector<2x256xi1>, vector<2x256xf32>
    %165 = math.tanh %164 : vector<2x256xf32>
    %cst_55 = arith.constant 1.000000e+00 : f32
    %166 = vector.broadcast %cst_55 : f32 to vector<2x256xf32>
    %167 = arith.addf %165, %166 : vector<2x256xf32>
    %cst_56 = arith.constant 5.000000e-01 : f32
    %168 = vector.broadcast %cst_56 : f32 to vector<2x256xf32>
    %169 = arith.mulf %168, %167 : vector<2x256xf32>
    %170 = arith.select %25, %165, %169 : vector<2x256xi1>, vector<2x256xf32>
    %171 = vector.extract_strided_slice %170 {offsets = [0, 0], sizes = [2, 64], strides = [1, 1]} : vector<2x256xf32> to vector<2x64xf32>
    %172 = vector.extract_strided_slice %170 {offsets = [0, 64], sizes = [2, 64], strides = [1, 1]} : vector<2x256xf32> to vector<2x64xf32>
    %173 = vector.extract_strided_slice %170 {offsets = [0, 128], sizes = [2, 64], strides = [1, 1]} : vector<2x256xf32> to vector<2x64xf32>
    %174 = vector.extract_strided_slice %170 {offsets = [0, 192], sizes = [2, 64], strides = [1, 1]} : vector<2x256xf32> to vector<2x64xf32>
    %175 = arith.mulf %172, %113 : vector<2x64xf32>
    %176 = arith.mulf %171, %173 : vector<2x64xf32>
    %177 = arith.addf %175, %176 : vector<2x64xf32>
    %178 = math.tanh %177 : vector<2x64xf32>
    %179 = arith.mulf %174, %178 : vector<2x64xf32>
    %cst_57 = arith.constant 0.707106769 : f32
    %180 = vector.broadcast %cst_57 : f32 to vector<2x64xf32>
    %181 = arith.mulf %179, %180 : vector<2x64xf32>
    %182 = math.absf %181 : vector<2x64xf32>
    %cst_58 = arith.constant 0.327591091 : f32
    %183 = vector.broadcast %cst_58 : f32 to vector<2x64xf32>
    %184 = arith.mulf %183, %182 : vector<2x64xf32>
    %cst_59 = arith.constant 1.000000e+00 : f32
    %185 = vector.broadcast %cst_59 : f32 to vector<2x64xf32>
    %186 = arith.addf %185, %184 : vector<2x64xf32>
    %cst_60 = arith.constant 1.000000e+00 : f32
    %187 = vector.broadcast %cst_60 : f32 to vector<2x64xf32>
    %188 = arith.divf %187, %186 : vector<2x64xf32>
    %cst_61 = arith.constant 1.06140542 : f32
    %189 = vector.broadcast %cst_61 : f32 to vector<2x64xf32>
    %190 = arith.mulf %189, %188 : vector<2x64xf32>
    %cst_62 = arith.constant -1.45315206 : f32
    %191 = vector.broadcast %cst_62 : f32 to vector<2x64xf32>
    %192 = arith.addf %190, %191 : vector<2x64xf32>
    %193 = arith.mulf %192, %188 : vector<2x64xf32>
    %cst_63 = arith.constant 1.42141378 : f32
    %194 = vector.broadcast %cst_63 : f32 to vector<2x64xf32>
    %195 = arith.addf %193, %194 : vector<2x64xf32>
    %196 = arith.mulf %195, %188 : vector<2x64xf32>
    %cst_64 = arith.constant -0.284496725 : f32
    %197 = vector.broadcast %cst_64 : f32 to vector<2x64xf32>
    %198 = arith.addf %196, %197 : vector<2x64xf32>
    %199 = arith.mulf %198, %188 : vector<2x64xf32>
    %cst_65 = arith.constant 0.254829586 : f32
    %200 = vector.broadcast %cst_65 : f32 to vector<2x64xf32>
    %201 = arith.addf %199, %200 : vector<2x64xf32>
    %202 = arith.mulf %201, %188 : vector<2x64xf32>
    %cst_66 = arith.constant 0.000000e+00 : f32
    %203 = vector.broadcast %cst_66 : f32 to vector<2x64xf32>
    %204 = arith.subf %203, %182 : vector<2x64xf32>
    %205 = arith.mulf %204, %182 : vector<2x64xf32>
    %206 = math.exp %205 : vector<2x64xf32>
    %207 = arith.mulf %202, %206 : vector<2x64xf32>
    %cst_67 = arith.constant 1.000000e+00 : f32
    %208 = vector.broadcast %cst_67 : f32 to vector<2x64xf32>
    %209 = arith.subf %208, %207 : vector<2x64xf32>
    %cst_68 = arith.constant 0.000000e+00 : f32
    %210 = vector.broadcast %cst_68 : f32 to vector<2x64xf32>
    %211 = arith.cmpf oge, %181, %210 : vector<2x64xf32>
    %cst_69 = arith.constant 0.000000e+00 : f32
    %212 = vector.broadcast %cst_69 : f32 to vector<2x64xf32>
    %213 = arith.subf %212, %209 : vector<2x64xf32>
    %214 = arith.select %211, %209, %213 : vector<2x64xi1>, vector<2x64xf32>
    %cst_70 = arith.constant 5.000000e-01 : f32
    %215 = vector.broadcast %cst_70 : f32 to vector<2x64xf32>
    %216 = arith.mulf %215, %179 : vector<2x64xf32>
    %cst_71 = arith.constant 1.000000e+00 : f32
    %217 = vector.broadcast %cst_71 : f32 to vector<2x64xf32>
    %218 = arith.addf %217, %214 : vector<2x64xf32>
    %219 = arith.mulf %216, %218 : vector<2x64xf32>
    %220 = arith.addf %156, %219 : vector<2x64xf32>
    %221 = vector.extract_strided_slice %14 {offsets = [6, 0], sizes = [2, 256], strides = [1, 1]} : vector<16x256xf32> to vector<2x256xf32>
    %222 = vector.extract_strided_slice %14 {offsets = [8, 0], sizes = [2, 256], strides = [1, 1]} : vector<16x256xf32> to vector<2x256xf32>
    %223 = arith.select %20, %221, %222 : vector<2x256xi1>, vector<2x256xf32>
    %cst_72 = arith.constant dense<0.000000e+00> : vector<2x256xf32>
    %224 = tpu.matmul %179, %15, %cst_72 {dimension_numbers = #tpu.dot_dimension_numbers<[1], [0], [0], [1], [0, 0, 1, 1], [], []>} : vector<2x64xf32>, vector<64x256xf32>, vector<2x256xf32> -> vector<2x256xf32>
    %225 = arith.addf %223, %224 : vector<2x256xf32>
    %cst_73 = arith.constant 5.000000e-01 : f32
    %226 = vector.broadcast %cst_73 : f32 to vector<2x256xf32>
    %227 = arith.mulf %226, %225 : vector<2x256xf32>
    %228 = arith.select %25, %225, %227 : vector<2x256xi1>, vector<2x256xf32>
    %229 = math.tanh %228 : vector<2x256xf32>
    %cst_74 = arith.constant 1.000000e+00 : f32
    %230 = vector.broadcast %cst_74 : f32 to vector<2x256xf32>
    %231 = arith.addf %229, %230 : vector<2x256xf32>
    %cst_75 = arith.constant 5.000000e-01 : f32
    %232 = vector.broadcast %cst_75 : f32 to vector<2x256xf32>
    %233 = arith.mulf %232, %231 : vector<2x256xf32>
    %234 = arith.select %25, %229, %233 : vector<2x256xi1>, vector<2x256xf32>
    %235 = vector.extract_strided_slice %234 {offsets = [0, 0], sizes = [2, 64], strides = [1, 1]} : vector<2x256xf32> to vector<2x64xf32>
    %236 = vector.extract_strided_slice %234 {offsets = [0, 64], sizes = [2, 64], strides = [1, 1]} : vector<2x256xf32> to vector<2x64xf32>
    %237 = vector.extract_strided_slice %234 {offsets = [0, 128], sizes = [2, 64], strides = [1, 1]} : vector<2x256xf32> to vector<2x64xf32>
    %238 = vector.extract_strided_slice %234 {offsets = [0, 192], sizes = [2, 64], strides = [1, 1]} : vector<2x256xf32> to vector<2x64xf32>
    %239 = arith.mulf %236, %177 : vector<2x64xf32>
    %240 = arith.mulf %235, %237 : vector<2x64xf32>
    %241 = arith.addf %239, %240 : vector<2x64xf32>
    %242 = math.tanh %241 : vector<2x64xf32>
    %243 = arith.mulf %238, %242 : vector<2x64xf32>
    %cst_76 = arith.constant 0.707106769 : f32
    %244 = vector.broadcast %cst_76 : f32 to vector<2x64xf32>
    %245 = arith.mulf %243, %244 : vector<2x64xf32>
    %246 = math.absf %245 : vector<2x64xf32>
    %cst_77 = arith.constant 0.327591091 : f32
    %247 = vector.broadcast %cst_77 : f32 to vector<2x64xf32>
    %248 = arith.mulf %247, %246 : vector<2x64xf32>
    %cst_78 = arith.constant 1.000000e+00 : f32
    %249 = vector.broadcast %cst_78 : f32 to vector<2x64xf32>
    %250 = arith.addf %249, %248 : vector<2x64xf32>
    %cst_79 = arith.constant 1.000000e+00 : f32
    %251 = vector.broadcast %cst_79 : f32 to vector<2x64xf32>
    %252 = arith.divf %251, %250 : vector<2x64xf32>
    %cst_80 = arith.constant 1.06140542 : f32
    %253 = vector.broadcast %cst_80 : f32 to vector<2x64xf32>
    %254 = arith.mulf %253, %252 : vector<2x64xf32>
    %cst_81 = arith.constant -1.45315206 : f32
    %255 = vector.broadcast %cst_81 : f32 to vector<2x64xf32>
    %256 = arith.addf %254, %255 : vector<2x64xf32>
    %257 = arith.mulf %256, %252 : vector<2x64xf32>
    %cst_82 = arith.constant 1.42141378 : f32
    %258 = vector.broadcast %cst_82 : f32 to vector<2x64xf32>
    %259 = arith.addf %257, %258 : vector<2x64xf32>
    %260 = arith.mulf %259, %252 : vector<2x64xf32>
    %cst_83 = arith.constant -0.284496725 : f32
    %261 = vector.broadcast %cst_83 : f32 to vector<2x64xf32>
    %262 = arith.addf %260, %261 : vector<2x64xf32>
    %263 = arith.mulf %262, %252 : vector<2x64xf32>
    %cst_84 = arith.constant 0.254829586 : f32
    %264 = vector.broadcast %cst_84 : f32 to vector<2x64xf32>
    %265 = arith.addf %263, %264 : vector<2x64xf32>
    %266 = arith.mulf %265, %252 : vector<2x64xf32>
    %cst_85 = arith.constant 0.000000e+00 : f32
    %267 = vector.broadcast %cst_85 : f32 to vector<2x64xf32>
    %268 = arith.subf %267, %246 : vector<2x64xf32>
    %269 = arith.mulf %268, %246 : vector<2x64xf32>
    %270 = math.exp %269 : vector<2x64xf32>
    %271 = arith.mulf %266, %270 : vector<2x64xf32>
    %cst_86 = arith.constant 1.000000e+00 : f32
    %272 = vector.broadcast %cst_86 : f32 to vector<2x64xf32>
    %273 = arith.subf %272, %271 : vector<2x64xf32>
    %cst_87 = arith.constant 0.000000e+00 : f32
    %274 = vector.broadcast %cst_87 : f32 to vector<2x64xf32>
    %275 = arith.cmpf oge, %245, %274 : vector<2x64xf32>
    %cst_88 = arith.constant 0.000000e+00 : f32
    %276 = vector.broadcast %cst_88 : f32 to vector<2x64xf32>
    %277 = arith.subf %276, %273 : vector<2x64xf32>
    %278 = arith.select %275, %273, %277 : vector<2x64xi1>, vector<2x64xf32>
    %cst_89 = arith.constant 5.000000e-01 : f32
    %279 = vector.broadcast %cst_89 : f32 to vector<2x64xf32>
    %280 = arith.mulf %279, %243 : vector<2x64xf32>
    %cst_90 = arith.constant 1.000000e+00 : f32
    %281 = vector.broadcast %cst_90 : f32 to vector<2x64xf32>
    %282 = arith.addf %281, %278 : vector<2x64xf32>
    %283 = arith.mulf %280, %282 : vector<2x64xf32>
    %284 = arith.addf %220, %283 : vector<2x64xf32>
    %285 = vector.extract_strided_slice %14 {offsets = [8, 0], sizes = [2, 256], strides = [1, 1]} : vector<16x256xf32> to vector<2x256xf32>
    %286 = vector.extract_strided_slice %14 {offsets = [6, 0], sizes = [2, 256], strides = [1, 1]} : vector<16x256xf32> to vector<2x256xf32>
    %287 = arith.select %20, %285, %286 : vector<2x256xi1>, vector<2x256xf32>
    %cst_91 = arith.constant dense<0.000000e+00> : vector<2x256xf32>
    %288 = tpu.matmul %243, %15, %cst_91 {dimension_numbers = #tpu.dot_dimension_numbers<[1], [0], [0], [1], [0, 0, 1, 1], [], []>} : vector<2x64xf32>, vector<64x256xf32>, vector<2x256xf32> -> vector<2x256xf32>
    %289 = arith.addf %287, %288 : vector<2x256xf32>
    %cst_92 = arith.constant 5.000000e-01 : f32
    %290 = vector.broadcast %cst_92 : f32 to vector<2x256xf32>
    %291 = arith.mulf %290, %289 : vector<2x256xf32>
    %292 = arith.select %25, %289, %291 : vector<2x256xi1>, vector<2x256xf32>
    %293 = math.tanh %292 : vector<2x256xf32>
    %cst_93 = arith.constant 1.000000e+00 : f32
    %294 = vector.broadcast %cst_93 : f32 to vector<2x256xf32>
    %295 = arith.addf %293, %294 : vector<2x256xf32>
    %cst_94 = arith.constant 5.000000e-01 : f32
    %296 = vector.broadcast %cst_94 : f32 to vector<2x256xf32>
    %297 = arith.mulf %296, %295 : vector<2x256xf32>
    %298 = arith.select %25, %293, %297 : vector<2x256xi1>, vector<2x256xf32>
    %299 = vector.extract_strided_slice %298 {offsets = [0, 0], sizes = [2, 64], strides = [1, 1]} : vector<2x256xf32> to vector<2x64xf32>
    %300 = vector.extract_strided_slice %298 {offsets = [0, 64], sizes = [2, 64], strides = [1, 1]} : vector<2x256xf32> to vector<2x64xf32>
    %301 = vector.extract_strided_slice %298 {offsets = [0, 128], sizes = [2, 64], strides = [1, 1]} : vector<2x256xf32> to vector<2x64xf32>
    %302 = vector.extract_strided_slice %298 {offsets = [0, 192], sizes = [2, 64], strides = [1, 1]} : vector<2x256xf32> to vector<2x64xf32>
    %303 = arith.mulf %300, %241 : vector<2x64xf32>
    %304 = arith.mulf %299, %301 : vector<2x64xf32>
    %305 = arith.addf %303, %304 : vector<2x64xf32>
    %306 = math.tanh %305 : vector<2x64xf32>
    %307 = arith.mulf %302, %306 : vector<2x64xf32>
    %cst_95 = arith.constant 0.707106769 : f32
    %308 = vector.broadcast %cst_95 : f32 to vector<2x64xf32>
    %309 = arith.mulf %307, %308 : vector<2x64xf32>
    %310 = math.absf %309 : vector<2x64xf32>
    %cst_96 = arith.constant 0.327591091 : f32
    %311 = vector.broadcast %cst_96 : f32 to vector<2x64xf32>
    %312 = arith.mulf %311, %310 : vector<2x64xf32>
    %cst_97 = arith.constant 1.000000e+00 : f32
    %313 = vector.broadcast %cst_97 : f32 to vector<2x64xf32>
    %314 = arith.addf %313, %312 : vector<2x64xf32>
    %cst_98 = arith.constant 1.000000e+00 : f32
    %315 = vector.broadcast %cst_98 : f32 to vector<2x64xf32>
    %316 = arith.divf %315, %314 : vector<2x64xf32>
    %cst_99 = arith.constant 1.06140542 : f32
    %317 = vector.broadcast %cst_99 : f32 to vector<2x64xf32>
    %318 = arith.mulf %317, %316 : vector<2x64xf32>
    %cst_100 = arith.constant -1.45315206 : f32
    %319 = vector.broadcast %cst_100 : f32 to vector<2x64xf32>
    %320 = arith.addf %318, %319 : vector<2x64xf32>
    %321 = arith.mulf %320, %316 : vector<2x64xf32>
    %cst_101 = arith.constant 1.42141378 : f32
    %322 = vector.broadcast %cst_101 : f32 to vector<2x64xf32>
    %323 = arith.addf %321, %322 : vector<2x64xf32>
    %324 = arith.mulf %323, %316 : vector<2x64xf32>
    %cst_102 = arith.constant -0.284496725 : f32
    %325 = vector.broadcast %cst_102 : f32 to vector<2x64xf32>
    %326 = arith.addf %324, %325 : vector<2x64xf32>
    %327 = arith.mulf %326, %316 : vector<2x64xf32>
    %cst_103 = arith.constant 0.254829586 : f32
    %328 = vector.broadcast %cst_103 : f32 to vector<2x64xf32>
    %329 = arith.addf %327, %328 : vector<2x64xf32>
    %330 = arith.mulf %329, %316 : vector<2x64xf32>
    %cst_104 = arith.constant 0.000000e+00 : f32
    %331 = vector.broadcast %cst_104 : f32 to vector<2x64xf32>
    %332 = arith.subf %331, %310 : vector<2x64xf32>
    %333 = arith.mulf %332, %310 : vector<2x64xf32>
    %334 = math.exp %333 : vector<2x64xf32>
    %335 = arith.mulf %330, %334 : vector<2x64xf32>
    %cst_105 = arith.constant 1.000000e+00 : f32
    %336 = vector.broadcast %cst_105 : f32 to vector<2x64xf32>
    %337 = arith.subf %336, %335 : vector<2x64xf32>
    %cst_106 = arith.constant 0.000000e+00 : f32
    %338 = vector.broadcast %cst_106 : f32 to vector<2x64xf32>
    %339 = arith.cmpf oge, %309, %338 : vector<2x64xf32>
    %cst_107 = arith.constant 0.000000e+00 : f32
    %340 = vector.broadcast %cst_107 : f32 to vector<2x64xf32>
    %341 = arith.subf %340, %337 : vector<2x64xf32>
    %342 = arith.select %339, %337, %341 : vector<2x64xi1>, vector<2x64xf32>
    %cst_108 = arith.constant 5.000000e-01 : f32
    %343 = vector.broadcast %cst_108 : f32 to vector<2x64xf32>
    %344 = arith.mulf %343, %307 : vector<2x64xf32>
    %cst_109 = arith.constant 1.000000e+00 : f32
    %345 = vector.broadcast %cst_109 : f32 to vector<2x64xf32>
    %346 = arith.addf %345, %342 : vector<2x64xf32>
    %347 = arith.mulf %344, %346 : vector<2x64xf32>
    %348 = arith.addf %284, %347 : vector<2x64xf32>
    %349 = vector.extract_strided_slice %14 {offsets = [10, 0], sizes = [2, 256], strides = [1, 1]} : vector<16x256xf32> to vector<2x256xf32>
    %350 = vector.extract_strided_slice %14 {offsets = [4, 0], sizes = [2, 256], strides = [1, 1]} : vector<16x256xf32> to vector<2x256xf32>
    %351 = arith.select %20, %349, %350 : vector<2x256xi1>, vector<2x256xf32>
    %cst_110 = arith.constant dense<0.000000e+00> : vector<2x256xf32>
    %352 = tpu.matmul %307, %15, %cst_110 {dimension_numbers = #tpu.dot_dimension_numbers<[1], [0], [0], [1], [0, 0, 1, 1], [], []>} : vector<2x64xf32>, vector<64x256xf32>, vector<2x256xf32> -> vector<2x256xf32>
    %353 = arith.addf %351, %352 : vector<2x256xf32>
    %cst_111 = arith.constant 5.000000e-01 : f32
    %354 = vector.broadcast %cst_111 : f32 to vector<2x256xf32>
    %355 = arith.mulf %354, %353 : vector<2x256xf32>
    %356 = arith.select %25, %353, %355 : vector<2x256xi1>, vector<2x256xf32>
    %357 = math.tanh %356 : vector<2x256xf32>
    %cst_112 = arith.constant 1.000000e+00 : f32
    %358 = vector.broadcast %cst_112 : f32 to vector<2x256xf32>
    %359 = arith.addf %357, %358 : vector<2x256xf32>
    %cst_113 = arith.constant 5.000000e-01 : f32
    %360 = vector.broadcast %cst_113 : f32 to vector<2x256xf32>
    %361 = arith.mulf %360, %359 : vector<2x256xf32>
    %362 = arith.select %25, %357, %361 : vector<2x256xi1>, vector<2x256xf32>
    %363 = vector.extract_strided_slice %362 {offsets = [0, 0], sizes = [2, 64], strides = [1, 1]} : vector<2x256xf32> to vector<2x64xf32>
    %364 = vector.extract_strided_slice %362 {offsets = [0, 64], sizes = [2, 64], strides = [1, 1]} : vector<2x256xf32> to vector<2x64xf32>
    %365 = vector.extract_strided_slice %362 {offsets = [0, 128], sizes = [2, 64], strides = [1, 1]} : vector<2x256xf32> to vector<2x64xf32>
    %366 = vector.extract_strided_slice %362 {offsets = [0, 192], sizes = [2, 64], strides = [1, 1]} : vector<2x256xf32> to vector<2x64xf32>
    %367 = arith.mulf %364, %305 : vector<2x64xf32>
    %368 = arith.mulf %363, %365 : vector<2x64xf32>
    %369 = arith.addf %367, %368 : vector<2x64xf32>
    %370 = math.tanh %369 : vector<2x64xf32>
    %371 = arith.mulf %366, %370 : vector<2x64xf32>
    %cst_114 = arith.constant 0.707106769 : f32
    %372 = vector.broadcast %cst_114 : f32 to vector<2x64xf32>
    %373 = arith.mulf %371, %372 : vector<2x64xf32>
    %374 = math.absf %373 : vector<2x64xf32>
    %cst_115 = arith.constant 0.327591091 : f32
    %375 = vector.broadcast %cst_115 : f32 to vector<2x64xf32>
    %376 = arith.mulf %375, %374 : vector<2x64xf32>
    %cst_116 = arith.constant 1.000000e+00 : f32
    %377 = vector.broadcast %cst_116 : f32 to vector<2x64xf32>
    %378 = arith.addf %377, %376 : vector<2x64xf32>
    %cst_117 = arith.constant 1.000000e+00 : f32
    %379 = vector.broadcast %cst_117 : f32 to vector<2x64xf32>
    %380 = arith.divf %379, %378 : vector<2x64xf32>
    %cst_118 = arith.constant 1.06140542 : f32
    %381 = vector.broadcast %cst_118 : f32 to vector<2x64xf32>
    %382 = arith.mulf %381, %380 : vector<2x64xf32>
    %cst_119 = arith.constant -1.45315206 : f32
    %383 = vector.broadcast %cst_119 : f32 to vector<2x64xf32>
    %384 = arith.addf %382, %383 : vector<2x64xf32>
    %385 = arith.mulf %384, %380 : vector<2x64xf32>
    %cst_120 = arith.constant 1.42141378 : f32
    %386 = vector.broadcast %cst_120 : f32 to vector<2x64xf32>
    %387 = arith.addf %385, %386 : vector<2x64xf32>
    %388 = arith.mulf %387, %380 : vector<2x64xf32>
    %cst_121 = arith.constant -0.284496725 : f32
    %389 = vector.broadcast %cst_121 : f32 to vector<2x64xf32>
    %390 = arith.addf %388, %389 : vector<2x64xf32>
    %391 = arith.mulf %390, %380 : vector<2x64xf32>
    %cst_122 = arith.constant 0.254829586 : f32
    %392 = vector.broadcast %cst_122 : f32 to vector<2x64xf32>
    %393 = arith.addf %391, %392 : vector<2x64xf32>
    %394 = arith.mulf %393, %380 : vector<2x64xf32>
    %cst_123 = arith.constant 0.000000e+00 : f32
    %395 = vector.broadcast %cst_123 : f32 to vector<2x64xf32>
    %396 = arith.subf %395, %374 : vector<2x64xf32>
    %397 = arith.mulf %396, %374 : vector<2x64xf32>
    %398 = math.exp %397 : vector<2x64xf32>
    %399 = arith.mulf %394, %398 : vector<2x64xf32>
    %cst_124 = arith.constant 1.000000e+00 : f32
    %400 = vector.broadcast %cst_124 : f32 to vector<2x64xf32>
    %401 = arith.subf %400, %399 : vector<2x64xf32>
    %cst_125 = arith.constant 0.000000e+00 : f32
    %402 = vector.broadcast %cst_125 : f32 to vector<2x64xf32>
    %403 = arith.cmpf oge, %373, %402 : vector<2x64xf32>
    %cst_126 = arith.constant 0.000000e+00 : f32
    %404 = vector.broadcast %cst_126 : f32 to vector<2x64xf32>
    %405 = arith.subf %404, %401 : vector<2x64xf32>
    %406 = arith.select %403, %401, %405 : vector<2x64xi1>, vector<2x64xf32>
    %cst_127 = arith.constant 5.000000e-01 : f32
    %407 = vector.broadcast %cst_127 : f32 to vector<2x64xf32>
    %408 = arith.mulf %407, %371 : vector<2x64xf32>
    %cst_128 = arith.constant 1.000000e+00 : f32
    %409 = vector.broadcast %cst_128 : f32 to vector<2x64xf32>
    %410 = arith.addf %409, %406 : vector<2x64xf32>
    %411 = arith.mulf %408, %410 : vector<2x64xf32>
    %412 = arith.addf %348, %411 : vector<2x64xf32>
    %413 = vector.extract_strided_slice %14 {offsets = [12, 0], sizes = [2, 256], strides = [1, 1]} : vector<16x256xf32> to vector<2x256xf32>
    %414 = vector.extract_strided_slice %14 {offsets = [2, 0], sizes = [2, 256], strides = [1, 1]} : vector<16x256xf32> to vector<2x256xf32>
    %415 = arith.select %20, %413, %414 : vector<2x256xi1>, vector<2x256xf32>
    %cst_129 = arith.constant dense<0.000000e+00> : vector<2x256xf32>
    %416 = tpu.matmul %371, %15, %cst_129 {dimension_numbers = #tpu.dot_dimension_numbers<[1], [0], [0], [1], [0, 0, 1, 1], [], []>} : vector<2x64xf32>, vector<64x256xf32>, vector<2x256xf32> -> vector<2x256xf32>
    %417 = arith.addf %415, %416 : vector<2x256xf32>
    %cst_130 = arith.constant 5.000000e-01 : f32
    %418 = vector.broadcast %cst_130 : f32 to vector<2x256xf32>
    %419 = arith.mulf %418, %417 : vector<2x256xf32>
    %420 = arith.select %25, %417, %419 : vector<2x256xi1>, vector<2x256xf32>
    %421 = math.tanh %420 : vector<2x256xf32>
    %cst_131 = arith.constant 1.000000e+00 : f32
    %422 = vector.broadcast %cst_131 : f32 to vector<2x256xf32>
    %423 = arith.addf %421, %422 : vector<2x256xf32>
    %cst_132 = arith.constant 5.000000e-01 : f32
    %424 = vector.broadcast %cst_132 : f32 to vector<2x256xf32>
    %425 = arith.mulf %424, %423 : vector<2x256xf32>
    %426 = arith.select %25, %421, %425 : vector<2x256xi1>, vector<2x256xf32>
    %427 = vector.extract_strided_slice %426 {offsets = [0, 0], sizes = [2, 64], strides = [1, 1]} : vector<2x256xf32> to vector<2x64xf32>
    %428 = vector.extract_strided_slice %426 {offsets = [0, 64], sizes = [2, 64], strides = [1, 1]} : vector<2x256xf32> to vector<2x64xf32>
    %429 = vector.extract_strided_slice %426 {offsets = [0, 128], sizes = [2, 64], strides = [1, 1]} : vector<2x256xf32> to vector<2x64xf32>
    %430 = vector.extract_strided_slice %426 {offsets = [0, 192], sizes = [2, 64], strides = [1, 1]} : vector<2x256xf32> to vector<2x64xf32>
    %431 = arith.mulf %428, %369 : vector<2x64xf32>
    %432 = arith.mulf %427, %429 : vector<2x64xf32>
    %433 = arith.addf %431, %432 : vector<2x64xf32>
    %434 = math.tanh %433 : vector<2x64xf32>
    %435 = arith.mulf %430, %434 : vector<2x64xf32>
    %cst_133 = arith.constant 0.707106769 : f32
    %436 = vector.broadcast %cst_133 : f32 to vector<2x64xf32>
    %437 = arith.mulf %435, %436 : vector<2x64xf32>
    %438 = math.absf %437 : vector<2x64xf32>
    %cst_134 = arith.constant 0.327591091 : f32
    %439 = vector.broadcast %cst_134 : f32 to vector<2x64xf32>
    %440 = arith.mulf %439, %438 : vector<2x64xf32>
    %cst_135 = arith.constant 1.000000e+00 : f32
    %441 = vector.broadcast %cst_135 : f32 to vector<2x64xf32>
    %442 = arith.addf %441, %440 : vector<2x64xf32>
    %cst_136 = arith.constant 1.000000e+00 : f32
    %443 = vector.broadcast %cst_136 : f32 to vector<2x64xf32>
    %444 = arith.divf %443, %442 : vector<2x64xf32>
    %cst_137 = arith.constant 1.06140542 : f32
    %445 = vector.broadcast %cst_137 : f32 to vector<2x64xf32>
    %446 = arith.mulf %445, %444 : vector<2x64xf32>
    %cst_138 = arith.constant -1.45315206 : f32
    %447 = vector.broadcast %cst_138 : f32 to vector<2x64xf32>
    %448 = arith.addf %446, %447 : vector<2x64xf32>
    %449 = arith.mulf %448, %444 : vector<2x64xf32>
    %cst_139 = arith.constant 1.42141378 : f32
    %450 = vector.broadcast %cst_139 : f32 to vector<2x64xf32>
    %451 = arith.addf %449, %450 : vector<2x64xf32>
    %452 = arith.mulf %451, %444 : vector<2x64xf32>
    %cst_140 = arith.constant -0.284496725 : f32
    %453 = vector.broadcast %cst_140 : f32 to vector<2x64xf32>
    %454 = arith.addf %452, %453 : vector<2x64xf32>
    %455 = arith.mulf %454, %444 : vector<2x64xf32>
    %cst_141 = arith.constant 0.254829586 : f32
    %456 = vector.broadcast %cst_141 : f32 to vector<2x64xf32>
    %457 = arith.addf %455, %456 : vector<2x64xf32>
    %458 = arith.mulf %457, %444 : vector<2x64xf32>
    %cst_142 = arith.constant 0.000000e+00 : f32
    %459 = vector.broadcast %cst_142 : f32 to vector<2x64xf32>
    %460 = arith.subf %459, %438 : vector<2x64xf32>
    %461 = arith.mulf %460, %438 : vector<2x64xf32>
    %462 = math.exp %461 : vector<2x64xf32>
    %463 = arith.mulf %458, %462 : vector<2x64xf32>
    %cst_143 = arith.constant 1.000000e+00 : f32
    %464 = vector.broadcast %cst_143 : f32 to vector<2x64xf32>
    %465 = arith.subf %464, %463 : vector<2x64xf32>
    %cst_144 = arith.constant 0.000000e+00 : f32
    %466 = vector.broadcast %cst_144 : f32 to vector<2x64xf32>
    %467 = arith.cmpf oge, %437, %466 : vector<2x64xf32>
    %cst_145 = arith.constant 0.000000e+00 : f32
    %468 = vector.broadcast %cst_145 : f32 to vector<2x64xf32>
    %469 = arith.subf %468, %465 : vector<2x64xf32>
    %470 = arith.select %467, %465, %469 : vector<2x64xi1>, vector<2x64xf32>
    %cst_146 = arith.constant 5.000000e-01 : f32
    %471 = vector.broadcast %cst_146 : f32 to vector<2x64xf32>
    %472 = arith.mulf %471, %435 : vector<2x64xf32>
    %cst_147 = arith.constant 1.000000e+00 : f32
    %473 = vector.broadcast %cst_147 : f32 to vector<2x64xf32>
    %474 = arith.addf %473, %470 : vector<2x64xf32>
    %475 = arith.mulf %472, %474 : vector<2x64xf32>
    %476 = arith.addf %412, %475 : vector<2x64xf32>
    %477 = vector.extract_strided_slice %14 {offsets = [14, 0], sizes = [2, 256], strides = [1, 1]} : vector<16x256xf32> to vector<2x256xf32>
    %478 = vector.extract_strided_slice %14 {offsets = [0, 0], sizes = [2, 256], strides = [1, 1]} : vector<16x256xf32> to vector<2x256xf32>
    %479 = arith.select %20, %477, %478 : vector<2x256xi1>, vector<2x256xf32>
    %cst_148 = arith.constant dense<0.000000e+00> : vector<2x256xf32>
    %480 = tpu.matmul %435, %15, %cst_148 {dimension_numbers = #tpu.dot_dimension_numbers<[1], [0], [0], [1], [0, 0, 1, 1], [], []>} : vector<2x64xf32>, vector<64x256xf32>, vector<2x256xf32> -> vector<2x256xf32>
    %481 = arith.addf %479, %480 : vector<2x256xf32>
    %cst_149 = arith.constant 5.000000e-01 : f32
    %482 = vector.broadcast %cst_149 : f32 to vector<2x256xf32>
    %483 = arith.mulf %482, %481 : vector<2x256xf32>
    %484 = arith.select %25, %481, %483 : vector<2x256xi1>, vector<2x256xf32>
    %485 = math.tanh %484 : vector<2x256xf32>
    %cst_150 = arith.constant 1.000000e+00 : f32
    %486 = vector.broadcast %cst_150 : f32 to vector<2x256xf32>
    %487 = arith.addf %485, %486 : vector<2x256xf32>
    %cst_151 = arith.constant 5.000000e-01 : f32
    %488 = vector.broadcast %cst_151 : f32 to vector<2x256xf32>
    %489 = arith.mulf %488, %487 : vector<2x256xf32>
    %490 = arith.select %25, %485, %489 : vector<2x256xi1>, vector<2x256xf32>
    %491 = vector.extract_strided_slice %490 {offsets = [0, 0], sizes = [2, 64], strides = [1, 1]} : vector<2x256xf32> to vector<2x64xf32>
    %492 = vector.extract_strided_slice %490 {offsets = [0, 64], sizes = [2, 64], strides = [1, 1]} : vector<2x256xf32> to vector<2x64xf32>
    %493 = vector.extract_strided_slice %490 {offsets = [0, 128], sizes = [2, 64], strides = [1, 1]} : vector<2x256xf32> to vector<2x64xf32>
    %494 = vector.extract_strided_slice %490 {offsets = [0, 192], sizes = [2, 64], strides = [1, 1]} : vector<2x256xf32> to vector<2x64xf32>
    %495 = arith.mulf %492, %433 : vector<2x64xf32>
    %496 = arith.mulf %491, %493 : vector<2x64xf32>
    %497 = arith.addf %495, %496 : vector<2x64xf32>
    %498 = math.tanh %497 : vector<2x64xf32>
    %499 = arith.mulf %494, %498 : vector<2x64xf32>
    %cst_152 = arith.constant 0.707106769 : f32
    %500 = vector.broadcast %cst_152 : f32 to vector<2x64xf32>
    %501 = arith.mulf %499, %500 : vector<2x64xf32>
    %502 = math.absf %501 : vector<2x64xf32>
    %cst_153 = arith.constant 0.327591091 : f32
    %503 = vector.broadcast %cst_153 : f32 to vector<2x64xf32>
    %504 = arith.mulf %503, %502 : vector<2x64xf32>
    %cst_154 = arith.constant 1.000000e+00 : f32
    %505 = vector.broadcast %cst_154 : f32 to vector<2x64xf32>
    %506 = arith.addf %505, %504 : vector<2x64xf32>
    %cst_155 = arith.constant 1.000000e+00 : f32
    %507 = vector.broadcast %cst_155 : f32 to vector<2x64xf32>
    %508 = arith.divf %507, %506 : vector<2x64xf32>
    %cst_156 = arith.constant 1.06140542 : f32
    %509 = vector.broadcast %cst_156 : f32 to vector<2x64xf32>
    %510 = arith.mulf %509, %508 : vector<2x64xf32>
    %cst_157 = arith.constant -1.45315206 : f32
    %511 = vector.broadcast %cst_157 : f32 to vector<2x64xf32>
    %512 = arith.addf %510, %511 : vector<2x64xf32>
    %513 = arith.mulf %512, %508 : vector<2x64xf32>
    %cst_158 = arith.constant 1.42141378 : f32
    %514 = vector.broadcast %cst_158 : f32 to vector<2x64xf32>
    %515 = arith.addf %513, %514 : vector<2x64xf32>
    %516 = arith.mulf %515, %508 : vector<2x64xf32>
    %cst_159 = arith.constant -0.284496725 : f32
    %517 = vector.broadcast %cst_159 : f32 to vector<2x64xf32>
    %518 = arith.addf %516, %517 : vector<2x64xf32>
    %519 = arith.mulf %518, %508 : vector<2x64xf32>
    %cst_160 = arith.constant 0.254829586 : f32
    %520 = vector.broadcast %cst_160 : f32 to vector<2x64xf32>
    %521 = arith.addf %519, %520 : vector<2x64xf32>
    %522 = arith.mulf %521, %508 : vector<2x64xf32>
    %cst_161 = arith.constant 0.000000e+00 : f32
    %523 = vector.broadcast %cst_161 : f32 to vector<2x64xf32>
    %524 = arith.subf %523, %502 : vector<2x64xf32>
    %525 = arith.mulf %524, %502 : vector<2x64xf32>
    %526 = math.exp %525 : vector<2x64xf32>
    %527 = arith.mulf %522, %526 : vector<2x64xf32>
    %cst_162 = arith.constant 1.000000e+00 : f32
    %528 = vector.broadcast %cst_162 : f32 to vector<2x64xf32>
    %529 = arith.subf %528, %527 : vector<2x64xf32>
    %cst_163 = arith.constant 0.000000e+00 : f32
    %530 = vector.broadcast %cst_163 : f32 to vector<2x64xf32>
    %531 = arith.cmpf oge, %501, %530 : vector<2x64xf32>
    %cst_164 = arith.constant 0.000000e+00 : f32
    %532 = vector.broadcast %cst_164 : f32 to vector<2x64xf32>
    %533 = arith.subf %532, %529 : vector<2x64xf32>
    %534 = arith.select %531, %529, %533 : vector<2x64xi1>, vector<2x64xf32>
    %cst_165 = arith.constant 5.000000e-01 : f32
    %535 = vector.broadcast %cst_165 : f32 to vector<2x64xf32>
    %536 = arith.mulf %535, %499 : vector<2x64xf32>
    %cst_166 = arith.constant 1.000000e+00 : f32
    %537 = vector.broadcast %cst_166 : f32 to vector<2x64xf32>
    %538 = arith.addf %537, %534 : vector<2x64xf32>
    %539 = arith.mulf %536, %538 : vector<2x64xf32>
    %540 = arith.addf %476, %539 : vector<2x64xf32>
    %c0_167 = arith.constant 0 : index
    %c0_168 = arith.constant 0 : index
    %541 = vector.load %arg5[%c0_167, %c0_168] : memref<64x5xf32, #tpu.memory_space<vmem>>, vector<64x5xf32>
    %cst_169 = arith.constant dense<0.000000e+00> : vector<2x5xf32>
    %542 = tpu.matmul %540, %541, %cst_169 {dimension_numbers = #tpu.dot_dimension_numbers<[1], [0], [0], [1], [0, 0, 1, 1], [], []>} : vector<2x64xf32>, vector<64x5xf32>, vector<2x5xf32> -> vector<2x5xf32>
    %c0_170 = arith.constant 0 : index
    %c0_171 = arith.constant 0 : index
    %543 = vector.load %arg6[%c0_170, %c0_171] : memref<1x5xf32, #tpu.memory_space<vmem>>, vector<1x5xf32>
    %544 = vector.broadcast %543 : vector<1x5xf32> to vector<2x5xf32>
    %545 = arith.addf %542, %544 : vector<2x5xf32>
    %cst_172 = arith.constant dense<0xFF800000> : vector<2xf32>
    %546 = vector.multi_reduction <maximumf>, %545, %cst_172 [1] : vector<2x5xf32> to vector<2xf32>
    %547 = vector.shape_cast %546 : vector<2xf32> to vector<2x1xf32>
    %548 = vector.broadcast %547 : vector<2x1xf32> to vector<2x5xf32>
    %549 = arith.subf %545, %548 : vector<2x5xf32>
    %550 = math.exp %549 : vector<2x5xf32>
    %cst_173 = arith.constant dense<0.000000e+00> : vector<2xf32>
    %551 = vector.multi_reduction <add>, %550, %cst_173 [1] : vector<2x5xf32> to vector<2xf32>
    %552 = vector.shape_cast %551 : vector<2xf32> to vector<2x1xf32>
    %553 = math.log %552 : vector<2x1xf32>
    %554 = vector.broadcast %553 : vector<2x1xf32> to vector<2x5xf32>
    %555 = arith.subf %549, %554 : vector<2x5xf32>
    %c0_174 = arith.constant 0 : index
    %c0_175 = arith.constant 0 : index
    %556 = vector.load %arg7[%c0_174, %c0_175] : memref<2x5xf32, #tpu.memory_space<vmem>>, vector<2x5xf32>
    tpu.vector_store %arg7[%c0_174, %c0_175], %555 {strides = array<i32>} : memref<2x5xf32, #tpu.memory_space<vmem>>, vector<2x5xf32>,
    return
  }
}

</mosaic_0001>

<llo_original>
// kernel: tpu_custom_call.1
$region0: #{tpu_custom_call.1}
  #allocation0 [shape = 'u32[]', space=smem, size = 0x4, offset = 0x4, fixed_abs, tag = 'smem constant byte address 0x4 - core index']
  #allocation1 [shape = 'u32[144,128]{1,0:T(1,128)}', space=vmem, size = 0x12000, scoped, tag = 'internal scratch']
  %s0 = inlined_call_operand.vmem [shape: f32[16,16], index: 0, kind: input, shape index: {}]
  %s1 = inlined_call_operand.vmem [shape: f32[16,16], index: 1, kind: input, shape index: {}]
  %s2 = inlined_call_operand.vmem [shape: f32[16,256], index: 2, kind: input, shape index: {}]
  %s3 = inlined_call_operand.vmem [shape: f32[1,256], index: 3, kind: input, shape index: {}]
  %s4 = inlined_call_operand.hbm [shape: f32[64,256], index: 4, kind: input, shape index: {}]
  %s5 = inlined_call_operand.vmem [shape: f32[64,5], index: 5, kind: input, shape index: {}]
  %s6 = inlined_call_operand.vmem [shape: f32[1,5], index: 6, kind: input, shape index: {}]
  %s7 = inlined_call_operand.hbm [shape: f32[2,5], index: 7, kind: output, shape index: {}]
  %s8 = sld [smem:[#allocation0]]
  $region42: #{tpu_custom_call.1} parent=0
    _
  %s10 = ssub.s32 1, %s8
  %s11 = scalar_select 0, %s10, %s8
  $region1: #{tpu_custom_call.1} parent=0
    #allocation2 [shape = 'u8[65536]{0}', space=vmem, size = 0x10000, scoped, tag = 'input window, operand 4, single buffered']
    #allocation3 [shape = 's32[1]{0}', space=sflag, size = 0x4, scoped, tag = 'scoped memory for tpu_custom_call.1']
    #allocation4 [shape = 's32[1]{0}', space=sflag, size = 0x4, scoped, tag = 'scoped memory for tpu_custom_call.1']
    #allocation5 [shape = 'u8[1024]{0}', space=vmem, size = 0x400, scoped, tag = 'output window, operand 0, single buffered']
    %12 = vsyncpa [#allocation3], 0
    %13 = vsyncpa [#allocation4], 0
    // Predicated region
    $region2: #{tpu_custom_call.1} parent=1 // pred_check
      _
    $region3: #{tpu_custom_call.1} parent=1 // pred_check_branch
      %15 = sbr.rel (0) target = $region5
    $region4: #{tpu_custom_call.1} parent=1 // pred_region
      _
    $region5: #{tpu_custom_call.1} parent=1 // pred_fallthru
      _
    // Predicated region
    $region6: #{tpu_custom_call.1} parent=1 // pred_check
      _
    $region7: #{tpu_custom_call.1} parent=1 // pred_check_branch
      %17 = sbr.rel (0) target = $region9
    $region8: #{tpu_custom_call.1} parent=1 // pred_region
      _
    $region9: #{tpu_custom_call.1} parent=1 // pred_fallthru
      _
    // Predicated region
    $region10: #{tpu_custom_call.1} parent=1 // pred_check
      _
    $region11: #{tpu_custom_call.1} parent=1 // pred_check_branch
      %19 = sbr.rel (0) target = $region13
    $region12: #{tpu_custom_call.1} parent=1 // pred_region
      _
    $region13: #{tpu_custom_call.1} parent=1 // pred_fallthru
      _
    // Predicated region
    $region14: #{tpu_custom_call.1} parent=1 // pred_check
      _
    $region15: #{tpu_custom_call.1} parent=1 // pred_check_branch
      %21 = sbr.rel (0) target = $region17
    $region16: #{tpu_custom_call.1} parent=1 // pred_region
      _
    $region17: #{tpu_custom_call.1} parent=1 // pred_fallthru
      _
    // Predicated region
    $region18: #{tpu_custom_call.1} parent=1 // pred_check
      _
    $region19: #{tpu_custom_call.1} parent=1 // pred_check_branch
      %23 = sbr.rel (0) target = $region21
    $region20: #{tpu_custom_call.1} parent=1 // pred_region
      %s25 = ssub.s32 2048, 2048
      %26 = vsyncadd [#allocation3], %s25
      %s27 = sshll.u32 [#allocation2], 4
      %s28 = int_to_ptr.vmem [resolvable:$true] %s27
      %33 = dma.hbm_to_vmem [thread:$0]  %s4, 2048, %s28, [#allocation3], 256, 256, 16
    $region21: #{tpu_custom_call.1} parent=1 // pred_fallthru
      _
    // Predicated region
    $region22: #{tpu_custom_call.1} parent=1 // pred_check
      _
    $region23: #{tpu_custom_call.1} parent=1 // pred_check_branch
      %35 = sbr.rel (0) target = $region25
    $region24: #{tpu_custom_call.1} parent=1 // pred_region
      _
    $region25: #{tpu_custom_call.1} parent=1 // pred_fallthru
      _
    // Predicated region
    $region26: #{tpu_custom_call.1} parent=1 // pred_check
      _
    $region27: #{tpu_custom_call.1} parent=1 // pred_check_branch
      %37 = sbr.rel (0) target = $region29
    $region28: #{tpu_custom_call.1} parent=1 // pred_region
      _
    $region29: #{tpu_custom_call.1} parent=1 // pred_fallthru
      _
    // Predicated region
    $region30: #{tpu_custom_call.1} parent=1 // pred_check
      _
    $region31: #{tpu_custom_call.1} parent=1 // pred_check_branch
      %39 = sbr.rel (0) target = $region33
    $region32: #{tpu_custom_call.1} parent=1 // pred_region
      %40 = dma.done [#allocation3], 2048
    $region33: #{tpu_custom_call.1} parent=1 // pred_fallthru
      _
    %v41 = vld [vmem:[%s0] sm:$0xff]
    %v42 = vld [vmem:[%s0 + $0x8] sm:$0xff]
    %v43 = vld [vmem:[%s1] sm:$0xff]
    %v44 = vld [vmem:[%s1 + $0x8] sm:$0xff]
    %v45 = vmul.f32 %v43, 0.5
    %v46 = vmul.f32 %v44, 0.5
    %v47 = vtanh.pop %v45
    %v48 = vtanh.pop %v46
    %v49 = vadd.f32 %v47, 1.0
    %v50 = vadd.f32 %v48, 1.0
    %v51 = vmul.f32 %v49, 0.5
    %v52 = vmul.f32 %v50, 0.5
    %v53 = vmul.f32 %v41, %v51
    %v54 = vmul.f32 %v42, %v52
    %v55 = vld [vmem:[%s2] sm:$0xff]
    %v56 = vld [vmem:[%s2 + $0x8] sm:$0xff]
    %v57 = vld [vmem:[%s2 + $0x10] sm:$0xff]
    %v58 = vld [vmem:[%s2 + $0x18] sm:$0xff]
    %v59 = vld [vmem:[%s3] sm:$0x3]
    %v61 = vlaneseq
    %v62 = vshrl.u32 %v61, 7
    %v63 = vsub.s32 0, %v62
    %v64 = vrot.slane %v59, %v63
    %v65 = vlaneseq
    %v66 = vshrl.u32 %v65, 7
    %v67 = vsub.s32 1, %v66
    %v68 = vrot.slane %v59, %v67
    %vm71 = vcmask 130048
    %v73 = vsel %vm71, %v53, 0
    %v76 = vsel %vm71, %v54, 0
    %78 = vmatprep.subr.mxu0 %v56
    %79 = vmatpush1.msra.mxu0 %v55
    %80 = vmatprep.subr.mxu0 %v58
    %81 = vmatpush1.msra.mxu0 %v57
    %82 = vmatprep.subr.mxu0 0.0
    %83 = vmatpush1.msra.mxu0 0.0
    %84 = vmatprep.subr.mxu0 0.0
    %85 = vmatpush1.msra.mxu0 0.0
    %86 = vmatprep.subr.mxu0 0.0
    %87 = vmatpush1.msra.mxu0 0.0
    %88 = vmatprep.subr.mxu0 0.0
    %89 = vmatpush1.msra.mxu0 0.0
    %90 = vmatprep.subr.mxu0 0.0
    %91 = vmatpush1.msra.mxu0 0.0
    %92 = vmatprep.subr.mxu0 0.0
    %93 = vmatpush1.msra.mxu0 0.0
    %94 = vmatprep.subr.mxu0 0.0
    %95 = vmatpush1.msra.mxu0 0.0
    %96 = vmatprep.subr.mxu0 0.0
    %97 = vmatpush1.msra.mxu0 0.0
    %98 = vmatprep.subr.mxu0 0.0
    %99 = vmatpush1.msra.mxu0 0.0
    %100 = vmatprep.subr.mxu0 0.0
    %101 = vmatpush1.msra.mxu0 0.0
    %102 = vmatprep.subr.mxu0 0.0
    %103 = vmatpush1.msra.mxu0 0.0
    %104 = vmatprep.subr.mxu0 0.0
    %105 = vmatpush1.msra.mxu0 0.0
    %106 = vmatprep.subr.mxu0 0.0
    %107 = vmatpush1.msra.mxu0 0.0
    %108 = vmatprep.subr.mxu0 0.0
    %109 = vmatpush1.msra.mxu0 0.0
    %110 = vmatprep.subr.mxu0 0.0
    %111 = vmatpush1.msra.mxu0 0.0
    %112 = vmatprep.subr.mxu0 0.0
    %113 = vmatpush1.msra.mxu0 0.0
    %114 = vmatprep.subr.mxu0 0.0
    %115 = vmatpush1.msra.mxu0 0.0
    %116 = vmatprep.subr.mxu0 0.0
    %117 = vmatpush1.msra.mxu0 0.0
    %118 = vmatprep.subr.mxu0 0.0
    %119 = vmatpush1.msra.mxu0 0.0
    %120 = vmatprep.subr.mxu0 0.0
    %121 = vmatpush1.msra.mxu0 0.0
    %122 = vmatprep.subr.mxu0 0.0
    %123 = vmatpush1.msra.mxu0 0.0
    %124 = vmatprep.subr.mxu0 0.0
    %125 = vmatpush1.msra.mxu0 0.0
    %126 = vmatprep.subr.mxu0 0.0
    %127 = vmatpush1.msra.mxu0 0.0
    %128 = vmatprep.subr.mxu0 0.0
    %129 = vmatpush1.msra.mxu0 0.0
    %130 = vmatprep.subr.mxu0 0.0
    %131 = vmatpush1.msra.mxu0 0.0
    %132 = vmatprep.subr.mxu0 0.0
    %133 = vmatpush1.msra.mxu0 0.0
    %134 = vmatprep.subr.mxu0 0.0
    %135 = vmatpush1.msra.mxu0 0.0
    %136 = vmatprep.subr.mxu0 0.0
    %137 = vmatpush1.msra.mxu0 0.0
    %138 = vmatprep.subr.mxu0 0.0
    %139 = vmatpush1.msra.mxu0 0.0
    %140 = vmatprep.subr.mxu0 0.0
    %141 = vmatpush1.msra.mxu0 0.0
    %142 = vmatprep.mubr.f32.mxu0 0.0
    %143 = vmatmul.mubr.f32.gmra.mrb[0].mxu0 %v73
    %v144 = vpop.f32.mrb[0].mxu0
    %v145 = vadd.f32 %v64, %v144
    %v146 = vpop.f32.mrb[0].mxu0
    %v147 = vadd.f32 %v68, %v146
    %148 = vmatprep.mubr.f32.mxu0 0.0
    %149 = vmatmul.mubr.f32.gmra.mrb[0].mxu0 %v76
    %v150 = vpop.f32.mrb[0].mxu0
    %v151 = vadd.f32 %v64, %v150
    %v152 = vpop.f32.mrb[0].mxu0
    %v153 = vadd.f32 %v68, %v152
    %154 = vdwg.mxu0
    %v155 = vld [vmem:[#allocation2] sm:$0xff]
    %v156 = vld [vmem:[#allocation2 + $0x8] sm:$0xff]
    %v157 = vld [vmem:[#allocation2 + $0x10] sm:$0xff]
    %v158 = vld [vmem:[#allocation2 + $0x18] sm:$0xff]
    %v159 = vld [vmem:[#allocation2 + $0x20] sm:$0xff]
    %v160 = vld [vmem:[#allocation2 + $0x28] sm:$0xff]
    %v161 = vld [vmem:[#allocation2 + $0x30] sm:$0xff]
    %v162 = vld [vmem:[#allocation2 + $0x38] sm:$0xff]
    %v163 = vld [vmem:[#allocation2 + $0x40] sm:$0xff]
    %v164 = vld [vmem:[#allocation2 + $0x48] sm:$0xff]
    %v165 = vld [vmem:[#allocation2 + $0x50] sm:$0xff]
    %v166 = vld [vmem:[#allocation2 + $0x58] sm:$0xff]
    %v167 = vld [vmem:[#allocation2 + $0x60] sm:$0xff]
    %v168 = vld [vmem:[#allocation2 + $0x68] sm:$0xff]
    %v169 = vld [vmem:[#allocation2 + $0x70] sm:$0xff]
    %v170 = vld [vmem:[#allocation2 + $0x78] sm:$0xff]
    %v171 = vlaneseq
    %v172 = vand.u32 %v171, 127
    %v173 = vadd.s32 %v172, 128
    %v174 = vand.u32 %v172, 32
    %v175 = vand.u32 %v173, 32
    %vm176 = vcmp.eq.s32.totalorder %v174, 0
    %vm177 = vcmp.eq.s32.totalorder %v175, 0
    %vm178 = vcmp.ge.s32.totalorder %v172, 128
    %vm179 = vcmp.ge.s32.totalorder %v173, 128
    %vm180 = vcmp.lt.s32.totalorder %v172, 192
    %vm181 = vcmp.lt.s32.totalorder %v173, 192
    %vm182 = vmand %vm178, %vm180
    %vm183 = vmand %vm179, %vm181
    %v186 = vrot.slane %v151, 6
    %v187 = vrot.slane %v153, 6
    %v190 = vsel %vm176, %v145, %v186
    %v191 = vsel %vm177, %v147, %v187
    %vm192 = vcmask 523264
    %v194 = vsel %vm192, 0.0, 0
    %196 = vmatprep.subr.mxu0 %v156
    %197 = vmatpush1.msra.mxu0 %v155
    %198 = vmatprep.subr.mxu0 %v158
    %199 = vmatpush1.msra.mxu0 %v157
    %200 = vmatprep.subr.mxu0 %v160
    %201 = vmatpush1.msra.mxu0 %v159
    %202 = vmatprep.subr.mxu0 %v162
    %203 = vmatpush1.msra.mxu0 %v161
    %204 = vmatprep.subr.mxu0 %v164
    %205 = vmatpush1.msra.mxu0 %v163
    %206 = vmatprep.subr.mxu0 %v166
    %207 = vmatpush1.msra.mxu0 %v165
    %208 = vmatprep.subr.mxu0 %v168
    %209 = vmatpush1.msra.mxu0 %v167
    %210 = vmatprep.subr.mxu0 %v170
    %211 = vmatpush1.msra.mxu0 %v169
    %212 = vmatprep.subr.mxu0 0.0
    %213 = vmatpush1.msra.mxu0 0.0
    %214 = vmatprep.subr.mxu0 0.0
    %215 = vmatpush1.msra.mxu0 0.0
    %216 = vmatprep.subr.mxu0 0.0
    %217 = vmatpush1.msra.mxu0 0.0
    %218 = vmatprep.subr.mxu0 0.0
    %219 = vmatpush1.msra.mxu0 0.0
    %220 = vmatprep.subr.mxu0 0.0
    %221 = vmatpush1.msra.mxu0 0.0
    %222 = vmatprep.subr.mxu0 0.0
    %223 = vmatpush1.msra.mxu0 0.0
    %224 = vmatprep.subr.mxu0 0.0
    %225 = vmatpush1.msra.mxu0 0.0
    %226 = vmatprep.subr.mxu0 0.0
    %227 = vmatpush1.msra.mxu0 0.0
    %228 = vmatprep.subr.mxu0 0.0
    %229 = vmatpush1.msra.mxu0 0.0
    %230 = vmatprep.subr.mxu0 0.0
    %231 = vmatpush1.msra.mxu0 0.0
    %232 = vmatprep.subr.mxu0 0.0
    %233 = vmatpush1.msra.mxu0 0.0
    %234 = vmatprep.subr.mxu0 0.0
    %235 = vmatpush1.msra.mxu0 0.0
    %236 = vmatprep.subr.mxu0 0.0
    %237 = vmatpush1.msra.mxu0 0.0
    %238 = vmatprep.subr.mxu0 0.0
    %239 = vmatpush1.msra.mxu0 0.0
    %240 = vmatprep.subr.mxu0 0.0
    %241 = vmatpush1.msra.mxu0 0.0
    %242 = vmatprep.subr.mxu0 0.0
    %243 = vmatpush1.msra.mxu0 0.0
    %244 = vmatprep.subr.mxu0 0.0
    %245 = vmatpush1.msra.mxu0 0.0
    %246 = vmatprep.subr.mxu0 0.0
    %247 = vmatpush1.msra.mxu0 0.0
    %248 = vmatprep.subr.mxu0 0.0
    %249 = vmatpush1.msra.mxu0 0.0
    %250 = vmatprep.subr.mxu0 0.0
    %251 = vmatpush1.msra.mxu0 0.0
    %252 = vmatprep.subr.mxu0 0.0
    %253 = vmatpush1.msra.mxu0 0.0
    %254 = vmatprep.subr.mxu0 0.0
    %255 = vmatpush1.msra.mxu0 0.0
    %256 = vmatprep.subr.mxu0 0.0
    %257 = vmatpush1.msra.mxu0 0.0
    %258 = vmatprep.subr.mxu0 0.0
    %259 = vmatpush1.msra.mxu0 0.0
    %260 = vmatprep.mubr.f32.mxu0 0.0
    %261 = vmatmul.mubr.f32.gmra.mrb[0].mxu0 %v194
    %v262 = vpop.f32.mrb[0].mxu0
    %v263 = vadd.f32 0.0, %v262
    %v264 = vpop.f32.mrb[0].mxu0
    %v265 = vadd.f32 0.0, %v264
    %266 = vdwg.mxu0
    %v267 = vadd.f32 %v190, %v263
    %v268 = vadd.f32 %v191, %v265
    %v269 = vmul.f32 %v267, 0.5
    %v270 = vmul.f32 %v268, 0.5
    %v271 = vsel %vm182, %v267, %v269
    %v272 = vsel %vm183, %v268, %v270
    %v273 = vtanh.pop %v271
    %v274 = vtanh.pop %v272
    %v275 = vadd.f32 %v273, 1.0
    %v276 = vadd.f32 %v274, 1.0
    %v277 = vmul.f32 %v275, 0.5
    %v278 = vmul.f32 %v276, 0.5
    %v279 = vsel %vm182, %v273, %v277
    %v280 = vsel %vm183, %v274, %v278
    %v281 = vmul.f32 %v279, 0.0
    %v282 = vmul.f32 %v279, %v280
    %284 = vrot.lane.b32.xlu0 %v282, 64
    %v285 = vpop.permute.xlu0 %284
    %v287 = vadd.f32 %v281, %v285
    %v288 = vtanh.pop %v287
    %v289 = vmul.f32 %v280, %v288
    %v290 = vmul.f32 %v289, 0.70710677
    %v291 = vand.u32 2147483647, %v290
    %v292 = vmul.f32 %v291, 0.3275911
    %v293 = vadd.f32 %v292, 1.0
    %v294 = vrcp.pop %v293
    %v295 = vmul.f32 1.0, %v294
    %v296 = vmul.f32 %v295, 1.0614054
    %v297 = vadd.f32 %v296, -1.4531521
    %v298 = vmul.f32 %v297, %v295
    %v299 = vadd.f32 %v298, 1.4214138
    %v300 = vmul.f32 %v299, %v295
    %v301 = vadd.f32 %v300, -0.28449672
    %v302 = vmul.f32 %v301, %v295
    %v303 = vadd.f32 %v302, 0.2548296
    %v304 = vmul.f32 %v303, %v295
    %v305 = vsub.f32 0.0, %v291
    %v306 = vmul.f32 %v305, %v291
    %v307 = vmul.f32 %v306, 1.442695
    %v308 = vpow.pop %v307
    %v309 = vmul.f32 %v304, %v308
    %v310 = vsub.f32 1.0, %v309
    %vm311 = vcmp.ge.f32.partialorder %v290, 0.0
    %v312 = vsub.f32 0.0, %v310
    %v313 = vsel %vm311, %v310, %v312
    %v314 = vmul.f32 %v289, 0.5
    %v315 = vadd.f32 %v313, 1.0
    %v316 = vmul.f32 %v314, %v315
    %v317 = vadd.f32 %v316, 0.0
    %v318 = vrot.slane %v151, 2
    %v319 = vrot.slane %v153, 2
    %v322 = vsel %vm176, %v145, %v318
    %v323 = vsel %vm177, %v147, %v319
    %325 = vrot.lane.b32.xlu0 %v289, 64
    %v326 = vpop.permute.xlu0 %325
    %v327 = vsel %vm192, %v326, 0
    %329 = vmatprep.subr.mxu0 %v156
    %330 = vmatpush1.msra.mxu0 %v155
    %331 = vmatprep.subr.mxu0 %v158
    %332 = vmatpush1.msra.mxu0 %v157
    %333 = vmatprep.subr.mxu0 %v160
    %334 = vmatpush1.msra.mxu0 %v159
    %335 = vmatprep.subr.mxu0 %v162
    %336 = vmatpush1.msra.mxu0 %v161
    %337 = vmatprep.subr.mxu0 %v164
    %338 = vmatpush1.msra.mxu0 %v163
    %339 = vmatprep.subr.mxu0 %v166
    %340 = vmatpush1.msra.mxu0 %v165
    %341 = vmatprep.subr.mxu0 %v168
    %342 = vmatpush1.msra.mxu0 %v167
    %343 = vmatprep.subr.mxu0 %v170
    %344 = vmatpush1.msra.mxu0 %v169
    %345 = vmatprep.subr.mxu0 0.0
    %346 = vmatpush1.msra.mxu0 0.0
    %347 = vmatprep.subr.mxu0 0.0
    %348 = vmatpush1.msra.mxu0 0.0
    %349 = vmatprep.subr.mxu0 0.0
    %350 = vmatpush1.msra.mxu0 0.0
    %351 = vmatprep.subr.mxu0 0.0
    %352 = vmatpush1.msra.mxu0 0.0
    %353 = vmatprep.subr.mxu0 0.0
    %354 = vmatpush1.msra.mxu0 0.0
    %355 = vmatprep.subr.mxu0 0.0
    %356 = vmatpush1.msra.mxu0 0.0
    %357 = vmatprep.subr.mxu0 0.0
    %358 = vmatpush1.msra.mxu0 0.0
    %359 = vmatprep.subr.mxu0 0.0
    %360 = vmatpush1.msra.mxu0 0.0
    %361 = vmatprep.subr.mxu0 0.0
    %362 = vmatpush1.msra.mxu0 0.0
    %363 = vmatprep.subr.mxu0 0.0
    %364 = vmatpush1.msra.mxu0 0.0
    %365 = vmatprep.subr.mxu0 0.0
    %366 = vmatpush1.msra.mxu0 0.0
    %367 = vmatprep.subr.mxu0 0.0
    %368 = vmatpush1.msra.mxu0 0.0
    %369 = vmatprep.subr.mxu0 0.0
    %370 = vmatpush1.msra.mxu0 0.0
    %371 = vmatprep.subr.mxu0 0.0
    %372 = vmatpush1.msra.mxu0 0.0
    %373 = vmatprep.subr.mxu0 0.0
    %374 = vmatpush1.msra.mxu0 0.0
    %375 = vmatprep.subr.mxu0 0.0
    %376 = vmatpush1.msra.mxu0 0.0
    %377 = vmatprep.subr.mxu0 0.0
    %378 = vmatpush1.msra.mxu0 0.0
    %379 = vmatprep.subr.mxu0 0.0
    %380 = vmatpush1.msra.mxu0 0.0
    %381 = vmatprep.subr.mxu0 0.0
    %382 = vmatpush1.msra.mxu0 0.0
    %383 = vmatprep.subr.mxu0 0.0
    %384 = vmatpush1.msra.mxu0 0.0
    %385 = vmatprep.subr.mxu0 0.0
    %386 = vmatpush1.msra.mxu0 0.0
    %387 = vmatprep.subr.mxu0 0.0
    %388 = vmatpush1.msra.mxu0 0.0
    %389 = vmatprep.subr.mxu0 0.0
    %390 = vmatpush1.msra.mxu0 0.0
    %391 = vmatprep.subr.mxu0 0.0
    %392 = vmatpush1.msra.mxu0 0.0
    %393 = vmatprep.mubr.f32.mxu0 0.0
    %394 = vmatmul.mubr.f32.gmra.mrb[0].mxu0 %v327
    %v395 = vpop.f32.mrb[0].mxu0
    %v396 = vadd.f32 0.0, %v395
    %v397 = vpop.f32.mrb[0].mxu0
    %v398 = vadd.f32 0.0, %v397
    %399 = vdwg.mxu0
    %v402 = vrot.slane %v396, 6
    %v403 = vrot.slane %v398, 6
    %v406 = vadd.f32 %v322, %v402
    %v407 = vadd.f32 %v323, %v403
    %v408 = vmul.f32 %v406, 0.5
    %v409 = vmul.f32 %v407, 0.5
    %v410 = vsel %vm182, %v406, %v408
    %v411 = vsel %vm183, %v407, %v409
    %v412 = vtanh.pop %v410
    %v413 = vtanh.pop %v411
    %v414 = vadd.f32 %v412, 1.0
    %v415 = vadd.f32 %v413, 1.0
    %v416 = vmul.f32 %v414, 0.5
    %v417 = vmul.f32 %v415, 0.5
    %v418 = vsel %vm182, %v412, %v416
    %v419 = vsel %vm183, %v413, %v417
    %v421 = vrot.slane %v287, 6
    %v423 = vmul.f32 %v418, %v421
    %v424 = vmul.f32 %v418, %v419
    %426 = vrot.lane.b32.xlu0 %v424, 64
    %v427 = vpop.permute.xlu0 %426
    %v429 = vadd.f32 %v423, %v427
    %v430 = vtanh.pop %v429
    %v431 = vmul.f32 %v419, %v430
    %v432 = vmul.f32 %v431, 0.70710677
    %v433 = vand.u32 2147483647, %v432
    %v434 = vmul.f32 %v433, 0.3275911
    %v435 = vadd.f32 %v434, 1.0
    %v436 = vrcp.pop %v435
    %v437 = vmul.f32 1.0, %v436
    %v438 = vmul.f32 %v437, 1.0614054
    %v439 = vadd.f32 %v438, -1.4531521
    %v440 = vmul.f32 %v439, %v437
    %v441 = vadd.f32 %v440, 1.4214138
    %v442 = vmul.f32 %v441, %v437
    %v443 = vadd.f32 %v442, -0.28449672
    %v444 = vmul.f32 %v443, %v437
    %v445 = vadd.f32 %v444, 0.2548296
    %v446 = vmul.f32 %v445, %v437
    %v447 = vsub.f32 0.0, %v433
    %v448 = vmul.f32 %v447, %v433
    %v449 = vmul.f32 %v448, 1.442695
    %v450 = vpow.pop %v449
    %v451 = vmul.f32 %v446, %v450
    %v452 = vsub.f32 1.0, %v451
    %vm453 = vcmp.ge.f32.partialorder %v432, 0.0
    %v454 = vsub.f32 0.0, %v452
    %v455 = vsel %vm453, %v452, %v454
    %v456 = vmul.f32 %v431, 0.5
    %v457 = vadd.f32 %v455, 1.0
    %v458 = vmul.f32 %v456, %v457
    %v460 = vrot.slane %v458, 2
    %v462 = vadd.f32 %v317, %v460
    %v464 = vrot.slane %v431, 2
    %465 = vrot.lane.b32.xlu0 %v464, 64
    %v466 = vpop.permute.xlu0 %465
    %v467 = vsel %vm192, %v466, 0
    %469 = vmatprep.subr.mxu0 %v156
    %470 = vmatpush1.msra.mxu0 %v155
    %471 = vmatprep.subr.mxu0 %v158
    %472 = vmatpush1.msra.mxu0 %v157
    %473 = vmatprep.subr.mxu0 %v160
    %474 = vmatpush1.msra.mxu0 %v159
    %475 = vmatprep.subr.mxu0 %v162
    %476 = vmatpush1.msra.mxu0 %v161
    %477 = vmatprep.subr.mxu0 %v164
    %478 = vmatpush1.msra.mxu0 %v163
    %479 = vmatprep.subr.mxu0 %v166
    %480 = vmatpush1.msra.mxu0 %v165
    %481 = vmatprep.subr.mxu0 %v168
    %482 = vmatpush1.msra.mxu0 %v167
    %483 = vmatprep.subr.mxu0 %v170
    %484 = vmatpush1.msra.mxu0 %v169
    %485 = vmatprep.subr.mxu0 0.0
    %486 = vmatpush1.msra.mxu0 0.0
    %487 = vmatprep.subr.mxu0 0.0
    %488 = vmatpush1.msra.mxu0 0.0
    %489 = vmatprep.subr.mxu0 0.0
    %490 = vmatpush1.msra.mxu0 0.0
    %491 = vmatprep.subr.mxu0 0.0
    %492 = vmatpush1.msra.mxu0 0.0
    %493 = vmatprep.subr.mxu0 0.0
    %494 = vmatpush1.msra.mxu0 0.0
    %495 = vmatprep.subr.mxu0 0.0
    %496 = vmatpush1.msra.mxu0 0.0
    %497 = vmatprep.subr.mxu0 0.0
    %498 = vmatpush1.msra.mxu0 0.0
    %499 = vmatprep.subr.mxu0 0.0
    %500 = vmatpush1.msra.mxu0 0.0
    %501 = vmatprep.subr.mxu0 0.0
    %502 = vmatpush1.msra.mxu0 0.0
    %503 = vmatprep.subr.mxu0 0.0
    %504 = vmatpush1.msra.mxu0 0.0
    %505 = vmatprep.subr.mxu0 0.0
    %506 = vmatpush1.msra.mxu0 0.0
    %507 = vmatprep.subr.mxu0 0.0
    %508 = vmatpush1.msra.mxu0 0.0
    %509 = vmatprep.subr.mxu0 0.0
    %510 = vmatpush1.msra.mxu0 0.0
    %511 = vmatprep.subr.mxu0 0.0
    %512 = vmatpush1.msra.mxu0 0.0
    %513 = vmatprep.subr.mxu0 0.0
    %514 = vmatpush1.msra.mxu0 0.0
    %515 = vmatprep.subr.mxu0 0.0
    %516 = vmatpush1.msra.mxu0 0.0
    %517 = vmatprep.subr.mxu0 0.0
    %518 = vmatpush1.msra.mxu0 0.0
    %519 = vmatprep.subr.mxu0 0.0
    %520 = vmatpush1.msra.mxu0 0.0
    %521 = vmatprep.subr.mxu0 0.0
    %522 = vmatpush1.msra.mxu0 0.0
    %523 = vmatprep.subr.mxu0 0.0
    %524 = vmatpush1.msra.mxu0 0.0
    %525 = vmatprep.subr.mxu0 0.0
    %526 = vmatpush1.msra.mxu0 0.0
    %527 = vmatprep.subr.mxu0 0.0
    %528 = vmatpush1.msra.mxu0 0.0
    %529 = vmatprep.subr.mxu0 0.0
    %530 = vmatpush1.msra.mxu0 0.0
    %531 = vmatprep.subr.mxu0 0.0
    %532 = vmatpush1.msra.mxu0 0.0
    %533 = vmatprep.mubr.f32.mxu0 0.0
    %534 = vmatmul.mubr.f32.gmra.mrb[0].mxu0 %v467
    %v535 = vpop.f32.mrb[0].mxu0
    %v536 = vadd.f32 0.0, %v535
    %v537 = vpop.f32.mrb[0].mxu0
    %v538 = vadd.f32 0.0, %v537
    %539 = vdwg.mxu0
    %v542 = vrot.slane %v536, 4
    %v543 = vrot.slane %v538, 4
    %v546 = vadd.f32 %v190, %v542
    %v547 = vadd.f32 %v191, %v543
    %v548 = vmul.f32 %v546, 0.5
    %v549 = vmul.f32 %v547, 0.5
    %v550 = vsel %vm182, %v546, %v548
    %v551 = vsel %vm183, %v547, %v549
    %v552 = vtanh.pop %v550
    %v553 = vtanh.pop %v551
    %v554 = vadd.f32 %v552, 1.0
    %v555 = vadd.f32 %v553, 1.0
    %v556 = vmul.f32 %v554, 0.5
    %v557 = vmul.f32 %v555, 0.5
    %v558 = vsel %vm182, %v552, %v556
    %v559 = vsel %vm183, %v553, %v557
    %v561 = vrot.slane %v429, 6
    %v563 = vmul.f32 %v558, %v561
    %v564 = vmul.f32 %v558, %v559
    %566 = vrot.lane.b32.xlu0 %v564, 64
    %v567 = vpop.permute.xlu0 %566
    %v569 = vadd.f32 %v563, %v567
    %v570 = vtanh.pop %v569
    %v571 = vmul.f32 %v559, %v570
    %v572 = vmul.f32 %v571, 0.70710677
    %v573 = vand.u32 2147483647, %v572
    %v574 = vmul.f32 %v573, 0.3275911
    %v575 = vadd.f32 %v574, 1.0
    %v576 = vrcp.pop %v575
    %v577 = vmul.f32 1.0, %v576
    %v578 = vmul.f32 %v577, 1.0614054
    %v579 = vadd.f32 %v578, -1.4531521
    %v580 = vmul.f32 %v579, %v577
    %v581 = vadd.f32 %v580, 1.4214138
    %v582 = vmul.f32 %v581, %v577
    %v583 = vadd.f32 %v582, -0.28449672
    %v584 = vmul.f32 %v583, %v577
    %v585 = vadd.f32 %v584, 0.2548296
    %v586 = vmul.f32 %v585, %v577
    %v587 = vsub.f32 0.0, %v573
    %v588 = vmul.f32 %v587, %v573
    %v589 = vmul.f32 %v588, 1.442695
    %v590 = vpow.pop %v589
    %v591 = vmul.f32 %v586, %v590
    %v592 = vsub.f32 1.0, %v591
    %vm593 = vcmp.ge.f32.partialorder %v572, 0.0
    %v594 = vsub.f32 0.0, %v592
    %v595 = vsel %vm593, %v592, %v594
    %v596 = vmul.f32 %v571, 0.5
    %v597 = vadd.f32 %v595, 1.0
    %v598 = vmul.f32 %v596, %v597
    %v600 = vrot.slane %v598, 4
    %v602 = vadd.f32 %v462, %v600
    %v604 = vrot.slane %v571, 4
    %605 = vrot.lane.b32.xlu0 %v604, 64
    %v606 = vpop.permute.xlu0 %605
    %v607 = vsel %vm192, %v606, 0
    %609 = vmatprep.subr.mxu0 %v156
    %610 = vmatpush1.msra.mxu0 %v155
    %611 = vmatprep.subr.mxu0 %v158
    %612 = vmatpush1.msra.mxu0 %v157
    %613 = vmatprep.subr.mxu0 %v160
    %614 = vmatpush1.msra.mxu0 %v159
    %615 = vmatprep.subr.mxu0 %v162
    %616 = vmatpush1.msra.mxu0 %v161
    %617 = vmatprep.subr.mxu0 %v164
    %618 = vmatpush1.msra.mxu0 %v163
    %619 = vmatprep.subr.mxu0 %v166
    %620 = vmatpush1.msra.mxu0 %v165
    %621 = vmatprep.subr.mxu0 %v168
    %622 = vmatpush1.msra.mxu0 %v167
    %623 = vmatprep.subr.mxu0 %v170
    %624 = vmatpush1.msra.mxu0 %v169
    %625 = vmatprep.subr.mxu0 0.0
    %626 = vmatpush1.msra.mxu0 0.0
    %627 = vmatprep.subr.mxu0 0.0
    %628 = vmatpush1.msra.mxu0 0.0
    %629 = vmatprep.subr.mxu0 0.0
    %630 = vmatpush1.msra.mxu0 0.0
    %631 = vmatprep.subr.mxu0 0.0
    %632 = vmatpush1.msra.mxu0 0.0
    %633 = vmatprep.subr.mxu0 0.0
    %634 = vmatpush1.msra.mxu0 0.0
    %635 = vmatprep.subr.mxu0 0.0
    %636 = vmatpush1.msra.mxu0 0.0
    %637 = vmatprep.subr.mxu0 0.0
    %638 = vmatpush1.msra.mxu0 0.0
    %639 = vmatprep.subr.mxu0 0.0
    %640 = vmatpush1.msra.mxu0 0.0
    %641 = vmatprep.subr.mxu0 0.0
    %642 = vmatpush1.msra.mxu0 0.0
    %643 = vmatprep.subr.mxu0 0.0
    %644 = vmatpush1.msra.mxu0 0.0
    %645 = vmatprep.subr.mxu0 0.0
    %646 = vmatpush1.msra.mxu0 0.0
    %647 = vmatprep.subr.mxu0 0.0
    %648 = vmatpush1.msra.mxu0 0.0
    %649 = vmatprep.subr.mxu0 0.0
    %650 = vmatpush1.msra.mxu0 0.0
    %651 = vmatprep.subr.mxu0 0.0
    %652 = vmatpush1.msra.mxu0 0.0
    %653 = vmatprep.subr.mxu0 0.0
    %654 = vmatpush1.msra.mxu0 0.0
    %655 = vmatprep.subr.mxu0 0.0
    %656 = vmatpush1.msra.mxu0 0.0
    %657 = vmatprep.subr.mxu0 0.0
    %658 = vmatpush1.msra.mxu0 0.0
    %659 = vmatprep.subr.mxu0 0.0
    %660 = vmatpush1.msra.mxu0 0.0
    %661 = vmatprep.subr.mxu0 0.0
    %662 = vmatpush1.msra.mxu0 0.0
    %663 = vmatprep.subr.mxu0 0.0
    %664 = vmatpush1.msra.mxu0 0.0
    %665 = vmatprep.subr.mxu0 0.0
    %666 = vmatpush1.msra.mxu0 0.0
    %667 = vmatprep.subr.mxu0 0.0
    %668 = vmatpush1.msra.mxu0 0.0
    %669 = vmatprep.subr.mxu0 0.0
    %670 = vmatpush1.msra.mxu0 0.0
    %671 = vmatprep.subr.mxu0 0.0
    %672 = vmatpush1.msra.mxu0 0.0
    %673 = vmatprep.mubr.f32.mxu0 0.0
    %674 = vmatmul.mubr.f32.gmra.mrb[0].mxu0 %v607
    %v675 = vpop.f32.mrb[0].mxu0
    %v676 = vadd.f32 0.0, %v675
    %v677 = vpop.f32.mrb[0].mxu0
    %v678 = vadd.f32 0.0, %v677
    %679 = vdwg.mxu0
    %v682 = vrot.slane %v676, 2
    %v683 = vrot.slane %v678, 2
    %v686 = vadd.f32 %v322, %v682
    %v687 = vadd.f32 %v323, %v683
    %v688 = vmul.f32 %v686, 0.5
    %v689 = vmul.f32 %v687, 0.5
    %v690 = vsel %vm182, %v686, %v688
    %v691 = vsel %vm183, %v687, %v689
    %v692 = vtanh.pop %v690
    %v693 = vtanh.pop %v691
    %v694 = vadd.f32 %v692, 1.0
    %v695 = vadd.f32 %v693, 1.0
    %v696 = vmul.f32 %v694, 0.5
    %v697 = vmul.f32 %v695, 0.5
    %v698 = vsel %vm182, %v692, %v696
    %v699 = vsel %vm183, %v693, %v697
    %v701 = vrot.slane %v569, 6
    %v703 = vmul.f32 %v698, %v701
    %v704 = vmul.f32 %v698, %v699
    %706 = vrot.lane.b32.xlu0 %v704, 64
    %v707 = vpop.permute.xlu0 %706
    %v709 = vadd.f32 %v703, %v707
    %v710 = vtanh.pop %v709
    %v711 = vmul.f32 %v699, %v710
    %v712 = vmul.f32 %v711, 0.70710677
    %v713 = vand.u32 2147483647, %v712
    %v714 = vmul.f32 %v713, 0.3275911
    %v715 = vadd.f32 %v714, 1.0
    %v716 = vrcp.pop %v715
    %v717 = vmul.f32 1.0, %v716
    %v718 = vmul.f32 %v717, 1.0614054
    %v719 = vadd.f32 %v718, -1.4531521
    %v720 = vmul.f32 %v719, %v717
    %v721 = vadd.f32 %v720, 1.4214138
    %v722 = vmul.f32 %v721, %v717
    %v723 = vadd.f32 %v722, -0.28449672
    %v724 = vmul.f32 %v723, %v717
    %v725 = vadd.f32 %v724, 0.2548296
    %v726 = vmul.f32 %v725, %v717
    %v727 = vsub.f32 0.0, %v713
    %v728 = vmul.f32 %v727, %v713
    %v729 = vmul.f32 %v728, 1.442695
    %v730 = vpow.pop %v729
    %v731 = vmul.f32 %v726, %v730
    %v732 = vsub.f32 1.0, %v731
    %vm733 = vcmp.ge.f32.partialorder %v712, 0.0
    %v734 = vsub.f32 0.0, %v732
    %v735 = vsel %vm733, %v732, %v734
    %v736 = vmul.f32 %v711, 0.5
    %v737 = vadd.f32 %v735, 1.0
    %v738 = vmul.f32 %v736, %v737
    %v740 = vrot.slane %v738, 6
    %v742 = vadd.f32 %v602, %v740
    %v745 = vrot.slane %v145, 6
    %v746 = vrot.slane %v147, 6
    %v749 = vsel %vm176, %v151, %v745
    %v750 = vsel %vm177, %v153, %v746
    %v752 = vrot.slane %v711, 6
    %753 = vrot.lane.b32.xlu0 %v752, 64
    %v754 = vpop.permute.xlu0 %753
    %v755 = vsel %vm192, %v754, 0
    %757 = vmatprep.subr.mxu0 %v156
    %758 = vmatpush1.msra.mxu0 %v155
    %759 = vmatprep.subr.mxu0 %v158
    %760 = vmatpush1.msra.mxu0 %v157
    %761 = vmatprep.subr.mxu0 %v160
    %762 = vmatpush1.msra.mxu0 %v159
    %763 = vmatprep.subr.mxu0 %v162
    %764 = vmatpush1.msra.mxu0 %v161
    %765 = vmatprep.subr.mxu0 %v164
    %766 = vmatpush1.msra.mxu0 %v163
    %767 = vmatprep.subr.mxu0 %v166
    %768 = vmatpush1.msra.mxu0 %v165
    %769 = vmatprep.subr.mxu0 %v168
    %770 = vmatpush1.msra.mxu0 %v167
    %771 = vmatprep.subr.mxu0 %v170
    %772 = vmatpush1.msra.mxu0 %v169
    %773 = vmatprep.subr.mxu0 0.0
    %774 = vmatpush1.msra.mxu0 0.0
    %775 = vmatprep.subr.mxu0 0.0
    %776 = vmatpush1.msra.mxu0 0.0
    %777 = vmatprep.subr.mxu0 0.0
    %778 = vmatpush1.msra.mxu0 0.0
    %779 = vmatprep.subr.mxu0 0.0
    %780 = vmatpush1.msra.mxu0 0.0
    %781 = vmatprep.subr.mxu0 0.0
    %782 = vmatpush1.msra.mxu0 0.0
    %783 = vmatprep.subr.mxu0 0.0
    %784 = vmatpush1.msra.mxu0 0.0
    %785 = vmatprep.subr.mxu0 0.0
    %786 = vmatpush1.msra.mxu0 0.0
    %787 = vmatprep.subr.mxu0 0.0
    %788 = vmatpush1.msra.mxu0 0.0
    %789 = vmatprep.subr.mxu0 0.0
    %790 = vmatpush1.msra.mxu0 0.0
    %791 = vmatprep.subr.mxu0 0.0
    %792 = vmatpush1.msra.mxu0 0.0
    %793 = vmatprep.subr.mxu0 0.0
    %794 = vmatpush1.msra.mxu0 0.0
    %795 = vmatprep.subr.mxu0 0.0
    %796 = vmatpush1.msra.mxu0 0.0
    %797 = vmatprep.subr.mxu0 0.0
    %798 = vmatpush1.msra.mxu0 0.0
    %799 = vmatprep.subr.mxu0 0.0
    %800 = vmatpush1.msra.mxu0 0.0
    %801 = vmatprep.subr.mxu0 0.0
    %802 = vmatpush1.msra.mxu0 0.0
    %803 = vmatprep.subr.mxu0 0.0
    %804 = vmatpush1.msra.mxu0 0.0
    %805 = vmatprep.subr.mxu0 0.0
    %806 = vmatpush1.msra.mxu0 0.0
    %807 = vmatprep.subr.mxu0 0.0
    %808 = vmatpush1.msra.mxu0 0.0
    %809 = vmatprep.subr.mxu0 0.0
    %810 = vmatpush1.msra.mxu0 0.0
    %811 = vmatprep.subr.mxu0 0.0
    %812 = vmatpush1.msra.mxu0 0.0
    %813 = vmatprep.subr.mxu0 0.0
    %814 = vmatpush1.msra.mxu0 0.0
    %815 = vmatprep.subr.mxu0 0.0
    %816 = vmatpush1.msra.mxu0 0.0
    %817 = vmatprep.subr.mxu0 0.0
    %818 = vmatpush1.msra.mxu0 0.0
    %819 = vmatprep.subr.mxu0 0.0
    %820 = vmatpush1.msra.mxu0 0.0
    %821 = vmatprep.mubr.f32.mxu0 0.0
    %822 = vmatmul.mubr.f32.gmra.mrb[0].mxu0 %v755
    %v823 = vpop.f32.mrb[0].mxu0
    %v824 = vadd.f32 0.0, %v823
    %v825 = vpop.f32.mrb[0].mxu0
    %v826 = vadd.f32 0.0, %v825
    %827 = vdwg.mxu0
    %v828 = vadd.f32 %v749, %v824
    %v829 = vadd.f32 %v750, %v826
    %v830 = vmul.f32 %v828, 0.5
    %v831 = vmul.f32 %v829, 0.5
    %v832 = vsel %vm182, %v828, %v830
    %v833 = vsel %vm183, %v829, %v831
    %v834 = vtanh.pop %v832
    %v835 = vtanh.pop %v833
    %v836 = vadd.f32 %v834, 1.0
    %v837 = vadd.f32 %v835, 1.0
    %v838 = vmul.f32 %v836, 0.5
    %v839 = vmul.f32 %v837, 0.5
    %v840 = vsel %vm182, %v834, %v838
    %v841 = vsel %vm183, %v835, %v839
    %v843 = vrot.slane %v709, 6
    %v845 = vmul.f32 %v840, %v843
    %v846 = vmul.f32 %v840, %v841
    %848 = vrot.lane.b32.xlu0 %v846, 64
    %v849 = vpop.permute.xlu0 %848
    %v851 = vadd.f32 %v845, %v849
    %v852 = vtanh.pop %v851
    %v853 = vmul.f32 %v841, %v852
    %v854 = vmul.f32 %v853, 0.70710677
    %v855 = vand.u32 2147483647, %v854
    %v856 = vmul.f32 %v855, 0.3275911
    %v857 = vadd.f32 %v856, 1.0
    %v858 = vrcp.pop %v857
    %v859 = vmul.f32 1.0, %v858
    %v860 = vmul.f32 %v859, 1.0614054
    %v861 = vadd.f32 %v860, -1.4531521
    %v862 = vmul.f32 %v861, %v859
    %v863 = vadd.f32 %v862, 1.4214138
    %v864 = vmul.f32 %v863, %v859
    %v865 = vadd.f32 %v864, -0.28449672
    %v866 = vmul.f32 %v865, %v859
    %v867 = vadd.f32 %v866, 0.2548296
    %v868 = vmul.f32 %v867, %v859
    %v869 = vsub.f32 0.0, %v855
    %v870 = vmul.f32 %v869, %v855
    %v871 = vmul.f32 %v870, 1.442695
    %v872 = vpow.pop %v871
    %v873 = vmul.f32 %v868, %v872
    %v874 = vsub.f32 1.0, %v873
    %vm875 = vcmp.ge.f32.partialorder %v854, 0.0
    %v876 = vsub.f32 0.0, %v874
    %v877 = vsel %vm875, %v874, %v876
    %v878 = vmul.f32 %v853, 0.5
    %v879 = vadd.f32 %v877, 1.0
    %v880 = vmul.f32 %v878, %v879
    %v881 = vadd.f32 %v742, %v880
    %v882 = vrot.slane %v145, 2
    %v883 = vrot.slane %v147, 2
    %v886 = vsel %vm176, %v151, %v882
    %v887 = vsel %vm177, %v153, %v883
    %889 = vrot.lane.b32.xlu0 %v853, 64
    %v890 = vpop.permute.xlu0 %889
    %v891 = vsel %vm192, %v890, 0
    %893 = vmatprep.subr.mxu0 %v156
    %894 = vmatpush1.msra.mxu0 %v155
    %895 = vmatprep.subr.mxu0 %v158
    %896 = vmatpush1.msra.mxu0 %v157
    %897 = vmatprep.subr.mxu0 %v160
    %898 = vmatpush1.msra.mxu0 %v159
    %899 = vmatprep.subr.mxu0 %v162
    %900 = vmatpush1.msra.mxu0 %v161
    %901 = vmatprep.subr.mxu0 %v164
    %902 = vmatpush1.msra.mxu0 %v163
    %903 = vmatprep.subr.mxu0 %v166
    %904 = vmatpush1.msra.mxu0 %v165
    %905 = vmatprep.subr.mxu0 %v168
    %906 = vmatpush1.msra.mxu0 %v167
    %907 = vmatprep.subr.mxu0 %v170
    %908 = vmatpush1.msra.mxu0 %v169
    %909 = vmatprep.subr.mxu0 0.0
    %910 = vmatpush1.msra.mxu0 0.0
    %911 = vmatprep.subr.mxu0 0.0
    %912 = vmatpush1.msra.mxu0 0.0
    %913 = vmatprep.subr.mxu0 0.0
    %914 = vmatpush1.msra.mxu0 0.0
    %915 = vmatprep.subr.mxu0 0.0
    %916 = vmatpush1.msra.mxu0 0.0
    %917 = vmatprep.subr.mxu0 0.0
    %918 = vmatpush1.msra.mxu0 0.0
    %919 = vmatprep.subr.mxu0 0.0
    %920 = vmatpush1.msra.mxu0 0.0
    %921 = vmatprep.subr.mxu0 0.0
    %922 = vmatpush1.msra.mxu0 0.0
    %923 = vmatprep.subr.mxu0 0.0
    %924 = vmatpush1.msra.mxu0 0.0
    %925 = vmatprep.subr.mxu0 0.0
    %926 = vmatpush1.msra.mxu0 0.0
    %927 = vmatprep.subr.mxu0 0.0
    %928 = vmatpush1.msra.mxu0 0.0
    %929 = vmatprep.subr.mxu0 0.0
    %930 = vmatpush1.msra.mxu0 0.0
    %931 = vmatprep.subr.mxu0 0.0
    %932 = vmatpush1.msra.mxu0 0.0
    %933 = vmatprep.subr.mxu0 0.0
    %934 = vmatpush1.msra.mxu0 0.0
    %935 = vmatprep.subr.mxu0 0.0
    %936 = vmatpush1.msra.mxu0 0.0
    %937 = vmatprep.subr.mxu0 0.0
    %938 = vmatpush1.msra.mxu0 0.0
    %939 = vmatprep.subr.mxu0 0.0
    %940 = vmatpush1.msra.mxu0 0.0
    %941 = vmatprep.subr.mxu0 0.0
    %942 = vmatpush1.msra.mxu0 0.0
    %943 = vmatprep.subr.mxu0 0.0
    %944 = vmatpush1.msra.mxu0 0.0
    %945 = vmatprep.subr.mxu0 0.0
    %946 = vmatpush1.msra.mxu0 0.0
    %947 = vmatprep.subr.mxu0 0.0
    %948 = vmatpush1.msra.mxu0 0.0
    %949 = vmatprep.subr.mxu0 0.0
    %950 = vmatpush1.msra.mxu0 0.0
    %951 = vmatprep.subr.mxu0 0.0
    %952 = vmatpush1.msra.mxu0 0.0
    %953 = vmatprep.subr.mxu0 0.0
    %954 = vmatpush1.msra.mxu0 0.0
    %955 = vmatprep.subr.mxu0 0.0
    %956 = vmatpush1.msra.mxu0 0.0
    %957 = vmatprep.mubr.f32.mxu0 0.0
    %958 = vmatmul.mubr.f32.gmra.mrb[0].mxu0 %v891
    %v959 = vpop.f32.mrb[0].mxu0
    %v960 = vadd.f32 0.0, %v959
    %v961 = vpop.f32.mrb[0].mxu0
    %v962 = vadd.f32 0.0, %v961
    %963 = vdwg.mxu0
    %v966 = vrot.slane %v960, 6
    %v967 = vrot.slane %v962, 6
    %v970 = vadd.f32 %v886, %v966
    %v971 = vadd.f32 %v887, %v967
    %v972 = vmul.f32 %v970, 0.5
    %v973 = vmul.f32 %v971, 0.5
    %v974 = vsel %vm182, %v970, %v972
    %v975 = vsel %vm183, %v971, %v973
    %v976 = vtanh.pop %v974
    %v977 = vtanh.pop %v975
    %v978 = vadd.f32 %v976, 1.0
    %v979 = vadd.f32 %v977, 1.0
    %v980 = vmul.f32 %v978, 0.5
    %v981 = vmul.f32 %v979, 0.5
    %v982 = vsel %vm182, %v976, %v980
    %v983 = vsel %vm183, %v977, %v981
    %v985 = vrot.slane %v851, 6
    %v987 = vmul.f32 %v982, %v985
    %v988 = vmul.f32 %v982, %v983
    %990 = vrot.lane.b32.xlu0 %v988, 64
    %v991 = vpop.permute.xlu0 %990
    %v993 = vadd.f32 %v987, %v991
    %v994 = vtanh.pop %v993
    %v995 = vmul.f32 %v983, %v994
    %v996 = vmul.f32 %v995, 0.70710677
    %v997 = vand.u32 2147483647, %v996
    %v998 = vmul.f32 %v997, 0.3275911
    %v999 = vadd.f32 %v998, 1.0
    %v1000 = vrcp.pop %v999
    %v1001 = vmul.f32 1.0, %v1000
    %v1002 = vmul.f32 %v1001, 1.0614054
    %v1003 = vadd.f32 %v1002, -1.4531521
    %v1004 = vmul.f32 %v1003, %v1001
    %v1005 = vadd.f32 %v1004, 1.4214138
    %v1006 = vmul.f32 %v1005, %v1001
    %v1007 = vadd.f32 %v1006, -0.28449672
    %v1008 = vmul.f32 %v1007, %v1001
    %v1009 = vadd.f32 %v1008, 0.2548296
    %v1010 = vmul.f32 %v1009, %v1001
    %v1011 = vsub.f32 0.0, %v997
    %v1012 = vmul.f32 %v1011, %v997
    %v1013 = vmul.f32 %v1012, 1.442695
    %v1014 = vpow.pop %v1013
    %v1015 = vmul.f32 %v1010, %v1014
    %v1016 = vsub.f32 1.0, %v1015
    %vm1017 = vcmp.ge.f32.partialorder %v996, 0.0
    %v1018 = vsub.f32 0.0, %v1016
    %v1019 = vsel %vm1017, %v1016, %v1018
    %v1020 = vmul.f32 %v995, 0.5
    %v1021 = vadd.f32 %v1019, 1.0
    %v1022 = vmul.f32 %v1020, %v1021
    %v1024 = vrot.slane %v1022, 2
    %v1026 = vadd.f32 %v881, %v1024
    %v1028 = vrot.slane %v995, 2
    %1029 = vrot.lane.b32.xlu0 %v1028, 64
    %v1030 = vpop.permute.xlu0 %1029
    %v1031 = vsel %vm192, %v1030, 0
    %1033 = vmatprep.subr.mxu0 %v156
    %1034 = vmatpush1.msra.mxu0 %v155
    %1035 = vmatprep.subr.mxu0 %v158
    %1036 = vmatpush1.msra.mxu0 %v157
    %1037 = vmatprep.subr.mxu0 %v160
    %1038 = vmatpush1.msra.mxu0 %v159
    %1039 = vmatprep.subr.mxu0 %v162
    %1040 = vmatpush1.msra.mxu0 %v161
    %1041 = vmatprep.subr.mxu0 %v164
    %1042 = vmatpush1.msra.mxu0 %v163
    %1043 = vmatprep.subr.mxu0 %v166
    %1044 = vmatpush1.msra.mxu0 %v165
    %1045 = vmatprep.subr.mxu0 %v168
    %1046 = vmatpush1.msra.mxu0 %v167
    %1047 = vmatprep.subr.mxu0 %v170
    %1048 = vmatpush1.msra.mxu0 %v169
    %1049 = vmatprep.subr.mxu0 0.0
    %1050 = vmatpush1.msra.mxu0 0.0
    %1051 = vmatprep.subr.mxu0 0.0
    %1052 = vmatpush1.msra.mxu0 0.0
    %1053 = vmatprep.subr.mxu0 0.0
    %1054 = vmatpush1.msra.mxu0 0.0
    %1055 = vmatprep.subr.mxu0 0.0
    %1056 = vmatpush1.msra.mxu0 0.0
    %1057 = vmatprep.subr.mxu0 0.0
    %1058 = vmatpush1.msra.mxu0 0.0
    %1059 = vmatprep.subr.mxu0 0.0
    %1060 = vmatpush1.msra.mxu0 0.0
    %1061 = vmatprep.subr.mxu0 0.0
    %1062 = vmatpush1.msra.mxu0 0.0
    %1063 = vmatprep.subr.mxu0 0.0
    %1064 = vmatpush1.msra.mxu0 0.0
    %1065 = vmatprep.subr.mxu0 0.0
    %1066 = vmatpush1.msra.mxu0 0.0
    %1067 = vmatprep.subr.mxu0 0.0
    %1068 = vmatpush1.msra.mxu0 0.0
    %1069 = vmatprep.subr.mxu0 0.0
    %1070 = vmatpush1.msra.mxu0 0.0
    %1071 = vmatprep.subr.mxu0 0.0
    %1072 = vmatpush1.msra.mxu0 0.0
    %1073 = vmatprep.subr.mxu0 0.0
    %1074 = vmatpush1.msra.mxu0 0.0
    %1075 = vmatprep.subr.mxu0 0.0
    %1076 = vmatpush1.msra.mxu0 0.0
    %1077 = vmatprep.subr.mxu0 0.0
    %1078 = vmatpush1.msra.mxu0 0.0
    %1079 = vmatprep.subr.mxu0 0.0
    %1080 = vmatpush1.msra.mxu0 0.0
    %1081 = vmatprep.subr.mxu0 0.0
    %1082 = vmatpush1.msra.mxu0 0.0
    %1083 = vmatprep.subr.mxu0 0.0
    %1084 = vmatpush1.msra.mxu0 0.0
    %1085 = vmatprep.subr.mxu0 0.0
    %1086 = vmatpush1.msra.mxu0 0.0
    %1087 = vmatprep.subr.mxu0 0.0
    %1088 = vmatpush1.msra.mxu0 0.0
    %1089 = vmatprep.subr.mxu0 0.0
    %1090 = vmatpush1.msra.mxu0 0.0
    %1091 = vmatprep.subr.mxu0 0.0
    %1092 = vmatpush1.msra.mxu0 0.0
    %1093 = vmatprep.subr.mxu0 0.0
    %1094 = vmatpush1.msra.mxu0 0.0
    %1095 = vmatprep.subr.mxu0 0.0
    %1096 = vmatpush1.msra.mxu0 0.0
    %1097 = vmatprep.mubr.f32.mxu0 0.0
    %1098 = vmatmul.mubr.f32.gmra.mrb[0].mxu0 %v1031
    %v1099 = vpop.f32.mrb[0].mxu0
    %v1100 = vadd.f32 0.0, %v1099
    %v1101 = vpop.f32.mrb[0].mxu0
    %v1102 = vadd.f32 0.0, %v1101
    %1103 = vdwg.mxu0
    %v1106 = vrot.slane %v1100, 4
    %v1107 = vrot.slane %v1102, 4
    %v1110 = vadd.f32 %v749, %v1106
    %v1111 = vadd.f32 %v750, %v1107
    %v1112 = vmul.f32 %v1110, 0.5
    %v1113 = vmul.f32 %v1111, 0.5
    %v1114 = vsel %vm182, %v1110, %v1112
    %v1115 = vsel %vm183, %v1111, %v1113
    %v1116 = vtanh.pop %v1114
    %v1117 = vtanh.pop %v1115
    %v1118 = vadd.f32 %v1116, 1.0
    %v1119 = vadd.f32 %v1117, 1.0
    %v1120 = vmul.f32 %v1118, 0.5
    %v1121 = vmul.f32 %v1119, 0.5
    %v1122 = vsel %vm182, %v1116, %v1120
    %v1123 = vsel %vm183, %v1117, %v1121
    %v1125 = vrot.slane %v993, 6
    %v1127 = vmul.f32 %v1122, %v1125
    %v1128 = vmul.f32 %v1122, %v1123
    %1130 = vrot.lane.b32.xlu0 %v1128, 64
    %v1131 = vpop.permute.xlu0 %1130
    %v1133 = vadd.f32 %v1127, %v1131
    %v1134 = vtanh.pop %v1133
    %v1135 = vmul.f32 %v1123, %v1134
    %v1136 = vmul.f32 %v1135, 0.70710677
    %v1137 = vand.u32 2147483647, %v1136
    %v1138 = vmul.f32 %v1137, 0.3275911
    %v1139 = vadd.f32 %v1138, 1.0
    %v1140 = vrcp.pop %v1139
    %v1141 = vmul.f32 1.0, %v1140
    %v1142 = vmul.f32 %v1141, 1.0614054
    %v1143 = vadd.f32 %v1142, -1.4531521
    %v1144 = vmul.f32 %v1143, %v1141
    %v1145 = vadd.f32 %v1144, 1.4214138
    %v1146 = vmul.f32 %v1145, %v1141
    %v1147 = vadd.f32 %v1146, -0.28449672
    %v1148 = vmul.f32 %v1147, %v1141
    %v1149 = vadd.f32 %v1148, 0.2548296
    %v1150 = vmul.f32 %v1149, %v1141
    %v1151 = vsub.f32 0.0, %v1137
    %v1152 = vmul.f32 %v1151, %v1137
    %v1153 = vmul.f32 %v1152, 1.442695
    %v1154 = vpow.pop %v1153
    %v1155 = vmul.f32 %v1150, %v1154
    %v1156 = vsub.f32 1.0, %v1155
    %vm1157 = vcmp.ge.f32.partialorder %v1136, 0.0
    %v1158 = vsub.f32 0.0, %v1156
    %v1159 = vsel %vm1157, %v1156, %v1158
    %v1160 = vmul.f32 %v1135, 0.5
    %v1161 = vadd.f32 %v1159, 1.0
    %v1162 = vmul.f32 %v1160, %v1161
    %v1164 = vrot.slane %v1162, 4
    %v1166 = vadd.f32 %v1026, %v1164
    %v1168 = vrot.slane %v1135, 4
    %1169 = vrot.lane.b32.xlu0 %v1168, 64
    %v1170 = vpop.permute.xlu0 %1169
    %v1171 = vsel %vm192, %v1170, 0
    %1173 = vmatprep.subr.mxu0 %v156
    %1174 = vmatpush1.msra.mxu0 %v155
    %1175 = vmatprep.subr.mxu0 %v158
    %1176 = vmatpush1.msra.mxu0 %v157
    %1177 = vmatprep.subr.mxu0 %v160
    %1178 = vmatpush1.msra.mxu0 %v159
    %1179 = vmatprep.subr.mxu0 %v162
    %1180 = vmatpush1.msra.mxu0 %v161
    %1181 = vmatprep.subr.mxu0 %v164
    %1182 = vmatpush1.msra.mxu0 %v163
    %1183 = vmatprep.subr.mxu0 %v166
    %1184 = vmatpush1.msra.mxu0 %v165
    %1185 = vmatprep.subr.mxu0 %v168
    %1186 = vmatpush1.msra.mxu0 %v167
    %1187 = vmatprep.subr.mxu0 %v170
    %1188 = vmatpush1.msra.mxu0 %v169
    %1189 = vmatprep.subr.mxu0 0.0
    %1190 = vmatpush1.msra.mxu0 0.0
    %1191 = vmatprep.subr.mxu0 0.0
    %1192 = vmatpush1.msra.mxu0 0.0
    %1193 = vmatprep.subr.mxu0 0.0
    %1194 = vmatpush1.msra.mxu0 0.0
    %1195 = vmatprep.subr.mxu0 0.0
    %1196 = vmatpush1.msra.mxu0 0.0
    %1197 = vmatprep.subr.mxu0 0.0
    %1198 = vmatpush1.msra.mxu0 0.0
    %1199 = vmatprep.subr.mxu0 0.0
    %1200 = vmatpush1.msra.mxu0 0.0
    %1201 = vmatprep.subr.mxu0 0.0
    %1202 = vmatpush1.msra.mxu0 0.0
    %1203 = vmatprep.subr.mxu0 0.0
    %1204 = vmatpush1.msra.mxu0 0.0
    %1205 = vmatprep.subr.mxu0 0.0
    %1206 = vmatpush1.msra.mxu0 0.0
    %1207 = vmatprep.subr.mxu0 0.0
    %1208 = vmatpush1.msra.mxu0 0.0
    %1209 = vmatprep.subr.mxu0 0.0
    %1210 = vmatpush1.msra.mxu0 0.0
    %1211 = vmatprep.subr.mxu0 0.0
    %1212 = vmatpush1.msra.mxu0 0.0
    %1213 = vmatprep.subr.mxu0 0.0
    %1214 = vmatpush1.msra.mxu0 0.0
    %1215 = vmatprep.subr.mxu0 0.0
    %1216 = vmatpush1.msra.mxu0 0.0
    %1217 = vmatprep.subr.mxu0 0.0
    %1218 = vmatpush1.msra.mxu0 0.0
    %1219 = vmatprep.subr.mxu0 0.0
    %1220 = vmatpush1.msra.mxu0 0.0
    %1221 = vmatprep.subr.mxu0 0.0
    %1222 = vmatpush1.msra.mxu0 0.0
    %1223 = vmatprep.subr.mxu0 0.0
    %1224 = vmatpush1.msra.mxu0 0.0
    %1225 = vmatprep.subr.mxu0 0.0
    %1226 = vmatpush1.msra.mxu0 0.0
    %1227 = vmatprep.subr.mxu0 0.0
    %1228 = vmatpush1.msra.mxu0 0.0
    %1229 = vmatprep.subr.mxu0 0.0
    %1230 = vmatpush1.msra.mxu0 0.0
    %1231 = vmatprep.subr.mxu0 0.0
    %1232 = vmatpush1.msra.mxu0 0.0
    %1233 = vmatprep.subr.mxu0 0.0
    %1234 = vmatpush1.msra.mxu0 0.0
    %1235 = vmatprep.subr.mxu0 0.0
    %1236 = vmatpush1.msra.mxu0 0.0
    %1237 = vmatprep.mubr.f32.mxu0 0.0
    %1238 = vmatmul.mubr.f32.gmra.mrb[0].mxu0 %v1171
    %v1239 = vpop.f32.mrb[0].mxu0
    %v1240 = vadd.f32 0.0, %v1239
    %v1241 = vpop.f32.mrb[0].mxu0
    %v1242 = vadd.f32 0.0, %v1241
    %1243 = vdwg.mxu0
    %v1246 = vrot.slane %v1240, 2
    %v1247 = vrot.slane %v1242, 2
    %v1250 = vadd.f32 %v886, %v1246
    %v1251 = vadd.f32 %v887, %v1247
    %v1252 = vmul.f32 %v1250, 0.5
    %v1253 = vmul.f32 %v1251, 0.5
    %v1254 = vsel %vm182, %v1250, %v1252
    %v1255 = vsel %vm183, %v1251, %v1253
    %v1256 = vtanh.pop %v1254
    %v1257 = vtanh.pop %v1255
    %v1258 = vadd.f32 %v1256, 1.0
    %v1259 = vadd.f32 %v1257, 1.0
    %v1260 = vmul.f32 %v1258, 0.5
    %v1261 = vmul.f32 %v1259, 0.5
    %v1262 = vsel %vm182, %v1256, %v1260
    %v1263 = vsel %vm183, %v1257, %v1261
    %v1265 = vrot.slane %v1133, 6
    %v1267 = vmul.f32 %v1262, %v1265
    %v1268 = vmul.f32 %v1262, %v1263
    %1270 = vrot.lane.b32.xlu0 %v1268, 64
    %v1271 = vpop.permute.xlu0 %1270
    %v1273 = vadd.f32 %v1267, %v1271
    %v1274 = vtanh.pop %v1273
    %v1275 = vmul.f32 %v1263, %v1274
    %v1276 = vmul.f32 %v1275, 0.70710677
    %v1277 = vand.u32 2147483647, %v1276
    %v1278 = vmul.f32 %v1277, 0.3275911
    %v1279 = vadd.f32 %v1278, 1.0
    %v1280 = vrcp.pop %v1279
    %v1281 = vmul.f32 1.0, %v1280
    %v1282 = vmul.f32 %v1281, 1.0614054
    %v1283 = vadd.f32 %v1282, -1.4531521
    %v1284 = vmul.f32 %v1283, %v1281
    %v1285 = vadd.f32 %v1284, 1.4214138
    %v1286 = vmul.f32 %v1285, %v1281
    %v1287 = vadd.f32 %v1286, -0.28449672
    %v1288 = vmul.f32 %v1287, %v1281
    %v1289 = vadd.f32 %v1288, 0.2548296
    %v1290 = vmul.f32 %v1289, %v1281
    %v1291 = vsub.f32 0.0, %v1277
    %v1292 = vmul.f32 %v1291, %v1277
    %v1293 = vmul.f32 %v1292, 1.442695
    %v1294 = vpow.pop %v1293
    %v1295 = vmul.f32 %v1290, %v1294
    %v1296 = vsub.f32 1.0, %v1295
    %vm1297 = vcmp.ge.f32.partialorder %v1276, 0.0
    %v1298 = vsub.f32 0.0, %v1296
    %v1299 = vsel %vm1297, %v1296, %v1298
    %v1300 = vmul.f32 %v1275, 0.5
    %v1301 = vadd.f32 %v1299, 1.0
    %v1302 = vmul.f32 %v1300, %v1301
    %v1304 = vrot.slane %v1302, 6
    %v1306 = vadd.f32 %v1166, %v1304
    %v1307 = vld [vmem:[%s5] sm:$0xff]
    %v1308 = vld [vmem:[%s5 + $0x8] sm:$0xff]
    %v1309 = vld [vmem:[%s5 + $0x10] sm:$0xff]
    %v1310 = vld [vmem:[%s5 + $0x18] sm:$0xff]
    %v1311 = vld [vmem:[%s5 + $0x20] sm:$0xff]
    %v1312 = vld [vmem:[%s5 + $0x28] sm:$0xff]
    %v1313 = vld [vmem:[%s5 + $0x30] sm:$0xff]
    %v1314 = vld [vmem:[%s5 + $0x38] sm:$0xff]
    %v1315 = vld [vmem:[%s6] sm:$0x1]
    %v1317 = vlaneseq
    %v1318 = vshrl.u32 %v1317, 7
    %v1319 = vsub.s32 0, %v1318
    %v1320 = vrot.slane %v1315, %v1319
    %1323 = vrot.lane.b32.xlu0 %v1306, 64
    %v1324 = vpop.permute.xlu0 %1323
    %v1325 = vsel %vm192, %v1324, 0
    %1327 = vmatprep.subr.mxu0 0.0
    %1328 = vmatpush1.msra.mxu0 %v1307
    %1329 = vmatprep.subr.mxu0 0.0
    %1330 = vmatpush1.msra.mxu0 %v1308
    %1331 = vmatprep.subr.mxu0 0.0
    %1332 = vmatpush1.msra.mxu0 %v1309
    %1333 = vmatprep.subr.mxu0 0.0
    %1334 = vmatpush1.msra.mxu0 %v1310
    %1335 = vmatprep.subr.mxu0 0.0
    %1336 = vmatpush1.msra.mxu0 %v1311
    %1337 = vmatprep.subr.mxu0 0.0
    %1338 = vmatpush1.msra.mxu0 %v1312
    %1339 = vmatprep.subr.mxu0 0.0
    %1340 = vmatpush1.msra.mxu0 %v1313
    %1341 = vmatprep.subr.mxu0 0.0
    %1342 = vmatpush1.msra.mxu0 %v1314
    %1343 = vmatprep.subr.mxu0 0.0
    %1344 = vmatpush1.msra.mxu0 0.0
    %1345 = vmatprep.subr.mxu0 0.0
    %1346 = vmatpush1.msra.mxu0 0.0
    %1347 = vmatprep.subr.mxu0 0.0
    %1348 = vmatpush1.msra.mxu0 0.0
    %1349 = vmatprep.subr.mxu0 0.0
    %1350 = vmatpush1.msra.mxu0 0.0
    %1351 = vmatprep.subr.mxu0 0.0
    %1352 = vmatpush1.msra.mxu0 0.0
    %1353 = vmatprep.subr.mxu0 0.0
    %1354 = vmatpush1.msra.mxu0 0.0
    %1355 = vmatprep.subr.mxu0 0.0
    %1356 = vmatpush1.msra.mxu0 0.0
    %1357 = vmatprep.subr.mxu0 0.0
    %1358 = vmatpush1.msra.mxu0 0.0
    %1359 = vmatprep.subr.mxu0 0.0
    %1360 = vmatpush1.msra.mxu0 0.0
    %1361 = vmatprep.subr.mxu0 0.0
    %1362 = vmatpush1.msra.mxu0 0.0
    %1363 = vmatprep.subr.mxu0 0.0
    %1364 = vmatpush1.msra.mxu0 0.0
    %1365 = vmatprep.subr.mxu0 0.0
    %1366 = vmatpush1.msra.mxu0 0.0
    %1367 = vmatprep.subr.mxu0 0.0
    %1368 = vmatpush1.msra.mxu0 0.0
    %1369 = vmatprep.subr.mxu0 0.0
    %1370 = vmatpush1.msra.mxu0 0.0
    %1371 = vmatprep.subr.mxu0 0.0
    %1372 = vmatpush1.msra.mxu0 0.0
    %1373 = vmatprep.subr.mxu0 0.0
    %1374 = vmatpush1.msra.mxu0 0.0
    %1375 = vmatprep.subr.mxu0 0.0
    %1376 = vmatpush1.msra.mxu0 0.0
    %1377 = vmatprep.subr.mxu0 0.0
    %1378 = vmatpush1.msra.mxu0 0.0
    %1379 = vmatprep.subr.mxu0 0.0
    %1380 = vmatpush1.msra.mxu0 0.0
    %1381 = vmatprep.subr.mxu0 0.0
    %1382 = vmatpush1.msra.mxu0 0.0
    %1383 = vmatprep.subr.mxu0 0.0
    %1384 = vmatpush1.msra.mxu0 0.0
    %1385 = vmatprep.subr.mxu0 0.0
    %1386 = vmatpush1.msra.mxu0 0.0
    %1387 = vmatprep.subr.mxu0 0.0
    %1388 = vmatpush1.msra.mxu0 0.0
    %1389 = vmatprep.subr.mxu0 0.0
    %1390 = vmatpush1.msra.mxu0 0.0
    %1391 = vmatprep.mubr.f32.mxu0 0.0
    %1392 = vmatmul.mubr.f32.gmra.mrb[0].mxu0 %v1325
    %v1393 = vpop.f32.mrb[0].mxu0
    %v1394 = vadd.f32 %v1320, %v1393
    %v1395 = vpop.f32.mrb[0].mxu0
    %1396 = vdwg.mxu0
    %vm1397 = vcmask 33792
    %v1398 = vsel %vm1397, %v1394, -inf
    %1399 = vmax.xlane.f32.xlu0 %v1398
    %v1400 = vpop.xlane.xlu0 %1399
    %v1401 = vsub.f32 %v1394, %v1400
    %v1402 = vmul.f32 %v1401, 1.442695
    %v1403 = vpow.pop %v1402
    %v1404 = vsel %vm1397, %v1403, 0.0
    %1405 = vadd.xlane.f32.xlu0 %v1404
    %v1406 = vpop.xlane.xlu0 %1405
    %v1407 = vlog2.pop %v1406
    %v1408 = vmul.f32 %v1407, 0.6931472
    %v1409 = vsub.f32 %v1401, %v1408
    %1410 = vst.msk [vmem:[#allocation5] sm:$0x3] %vm1397, %v1409
    // Predicated region
    $region34: #{tpu_custom_call.1} parent=1 // pred_check
      _
    $region35: #{tpu_custom_call.1} parent=1 // pred_check_branch
      %1412 = sbr.rel (0) target = $region37
    $region36: #{tpu_custom_call.1} parent=1 // pred_region
      %s1414 = ssub.s32 32, 32
      %1415 = vsyncadd [#allocation4], %s1414
      %s1417 = sshll.u32 [#allocation5], 4
      %s1418 = int_to_ptr.vmem [resolvable:$true] %s1417
      %1420 = dma.vmem_to_hbm [thread:$0]  %s1418, 32, %s7, [#allocation4]
    $region37: #{tpu_custom_call.1} parent=1 // pred_fallthru
      _
    // Predicated region
    $region38: #{tpu_custom_call.1} parent=1 // pred_check
      _
    $region39: #{tpu_custom_call.1} parent=1 // pred_check_branch
      %1422 = sbr.rel (0) target = $region41
    $region40: #{tpu_custom_call.1} parent=1 // pred_region
      %1423 = dma.done [#allocation4], 32
    $region41: #{tpu_custom_call.1} parent=1 // pred_fallthru
      _
    %1424 = vsyncpa [#allocation3], 1
    %1425 = vsyncpa [#allocation4], 1

</llo_original>
